<compile_context>
chip_gen: v7x
topology: tpu7x:2x2x1
jax: 0.10.0
libtpu: 0.0.40
codegen_flags: <defaults>
</compile_context>

<pallas_src>
import functools

import jax
import jax.numpy as jnp
from jax.experimental import pallas as pl
from jax.experimental.pallas import tpu as pltpu

_LEAKY_SLOPE = 0.01               # PyTorch LeakyReLU default


# --------------------------------------------------------------------------
# Pallas kernels
# --------------------------------------------------------------------------

def _convmix_kernel(x_ref, w_ref, b_ref, o_ref, *, pool):
    """Fused [MaxPool2d(2)] + 'same' pad + convmix + folded-BN + LeakyReLU.

    x_ref: pool: (1, 2*Hp, Wp, 2*Cin) bf16   (wrapper groups the two width
                                              neighbours into the lane dim via
                                              a free HBM reshape)
           else: (1, Hp,  Wp,   Cin)  bf16
    w_ref: (7, 7*Cin, COt) bf16   packed / BN-folded weights, width taps folded
                                   into the contraction dim (dx-major, ci-minor)
    b_ref: (1, COt) f32
    o_ref: (1, Hp*Wp, COt) bf16   output tile, spatially flattened
    """
    x = x_ref[0]
    if pool:
        hp = x.shape[0] // 2
        wp = x.shape[1]
        cin = x.shape[2] // 2
        # 2x2 max-pool: H pair via a leading-dim split, W pair via lane halves.
        x = x.reshape(hp, 2, wp, 2 * cin)
        x = jnp.maximum(x[:, 0], x[:, 1])                    # (hp, wp, 2*cin)
        x = jnp.maximum(x[:, :, :cin], x[:, :, cin:])        # (hp, wp, cin)
    else:
        hp, wp, cin = x.shape

    # 'same' zero padding (3 each side) built directly in VMEM — no HBM pass.
    zw = jnp.zeros((hp, 3, cin), x.dtype)
    x = jnp.concatenate([zw, x, zw], axis=1)                 # (hp, wp+6, cin)
    zh = jnp.zeros((3, wp + 6, cin), x.dtype)
    x = jnp.concatenate([zh, x, zh], axis=0)                 # (hp+6, wp+6, cin)

    # Width im2col: fold the 7 width taps into the contraction dim so the
    # 7x7 conv becomes 7 matmuls with K = 7*Cin.
    x2 = jnp.concatenate([x[:, dx:dx + wp, :] for dx in range(7)], axis=-1)
    x2 = x2.reshape((hp + 6) * wp, 7 * cin)

    m = hp * wp
    cot = o_ref.shape[-1]
    acc = jnp.zeros((m, cot), jnp.float32)
    for dy in range(7):                                      # height taps
        lhs = x2[dy * wp: dy * wp + m]                       # contiguous rows
        acc = acc + jnp.dot(lhs, w_ref[dy],
                            preferred_element_type=jnp.float32)

    # Epilogue: folded bias/BN + LeakyReLU, single lane-dense store.
    y = acc + b_ref[...]
    y = jnp.where(y >= 0.0, y, _LEAKY_SLOPE * y)
    o_ref[0] = y.astype(o_ref.dtype)


def _head_kernel(x_ref, w_ref, b_ref, o_ref):
    """AvgPool(full map) + Dropout(eval = identity) + Linear + Softmax.

    1/(apk*apk) of the average pool is pre-folded into w, so the pooling is a
    plain sum fused with the dot.  Exact softmax normalisation (f32).
    """
    x = x_ref[...].astype(jnp.float32)
    feat = jnp.sum(x, axis=1)                                # (N, C)
    logits = jnp.dot(feat, w_ref[...],
                     preferred_element_type=jnp.float32) + b_ref[...]
    mx = jnp.max(logits, axis=-1, keepdims=True)
    e = jnp.exp(logits - mx)
    o_ref[...] = e / jnp.sum(e, axis=-1, keepdims=True)


# --------------------------------------------------------------------------
# pallas_call wrappers
# --------------------------------------------------------------------------

def convmix_forward(x, w7, b, *, pool):
    """One fused [MaxPool2d(2)] + convmix + folded-BN + LeakyReLU layer.

    x  : (N, H, W, Cin) bf16 (channels-last)
    w7 : (7, 7, Cin, Cout) bf16 packed / BN-folded weights
    b  : (1, Cout) f32 folded bias
    returns (N, H', W', Cout) bf16 with H'=H/2, W'=W/2 when pool else H, W
    """
    n, h, w, cin = x.shape
    cout = w7.shape[-1]
    if pool:
        assert h % 2 == 0 and w % 2 == 0
        hp, wp = h // 2, w // 2
        x_in = x.reshape(n, h, wp, 2 * cin)     # free row-major regroup of (W,C)
    else:
        hp, wp = h, w
        x_in = x

    # Cout tiling only for very wide layers; tiles stay lane-dense (x128).
    if cout > 512 and cout % 128 == 0:
        co_t = 256 if cout % 256 == 0 else 128
    else:
        co_t = cout
    ncj = cout // co_t

    # Fold the width taps of the packed 7x7 kernel into the contraction dim.
    w_r = w7.reshape(7, 7 * cin, cout)

    # Per-layer VMEM budget: double-buffered blocks + in-kernel temporaries.
    blk_bytes = (x_in.shape[1] * x_in.shape[2] * x_in.shape[3] * 2   # input tile
                 + 7 * 7 * cin * co_t * 2                            # weights
                 + co_t * 4                                          # bias
                 + hp * wp * co_t * 2)                               # output tile
    tmp_bytes = ((hp + 6) * (wp + 6) * cin * 2                       # padded tile
                 + (hp + 6) * wp * 7 * cin * 2                       # width im2col
                 + hp * wp * co_t * 4)                               # f32 accumulator
    est_bytes = 2 * blk_bytes + tmp_bytes
    if est_bytes > (56 << 20):
        # TODO(synk): row/Cin tiling for huge configs (see file-level TODO).
        raise NotImplementedError(
            f"convmix working set ~{est_bytes >> 20} MiB exceeds the VMEM "
            "budget; this layer needs row/Cin tiling.")
    vmem_limit = int(min(64 << 20, max(32 << 20, est_bytes * 3 // 2)))

    kernel = functools.partial(_convmix_kernel, pool=pool)
    out = pl.pallas_call(
        kernel,
        out_shape=jax.ShapeDtypeStruct((n, hp * wp, cout), jnp.bfloat16),
        # Cout-tile axis j is the slowest grid axis so the (potentially
        # multi-MB) weight block is DMA'd once per j, not once per step.
        grid=(ncj, n),
        in_specs=[
            pl.BlockSpec((1,) + tuple(x_in.shape[1:]),
                         lambda j, i: (i, 0, 0, 0)),
            pl.BlockSpec((7, 7 * cin, co_t), lambda j, i: (0, 0, j)),
            pl.BlockSpec((1, co_t), lambda j, i: (0, j)),
        ],
        out_specs=pl.BlockSpec((1, hp * wp, co_t), lambda j, i: (i, 0, j)),
        compiler_params=pltpu.CompilerParams(
            dimension_semantics=("parallel", "parallel"),
            vmem_limit_bytes=vmem_limit),
    )(x_in, w_r, b)
    return out.reshape(n, hp, wp, cout)


def head_forward(x, w, b, apk):
    """AvgPool2d(apk) + flatten + Dropout(eval=identity) + Linear + Softmax."""
    n, h, wd, c = x.shape
    assert h == apk and wd == apk, "avg-pool window must cover the final map"
    s = h * wd
    w_scaled = (w / float(s)).astype(jnp.float32)    # fold 1/S of the avg pool
    return pl.pallas_call(
        _head_kernel,
        out_shape=jax.ShapeDtypeStruct((n, w.shape[1]), jnp.float32),
        in_specs=[pl.BlockSpec(memory_space=pltpu.MemorySpace.VMEM)] * 3,
        out_specs=pl.BlockSpec(memory_space=pltpu.MemorySpace.VMEM),
        compiler_params=pltpu.CompilerParams(vmem_limit_bytes=32 << 20),
    )(x.reshape(n, s, c), w_scaled, b)


# --------------------------------------------------------------------------
# module forward
# --------------------------------------------------------------------------

def label_block_fwd(x_nchw, params, apk):
    # NCHW -> NHWC once (channels-last = lane-dense), bf16 activations.
    x = jnp.transpose(x_nchw, (0, 2, 3, 1)).astype(jnp.bfloat16)
    for blk in params['blocks']:
        # MaxPool2d(2) is fused into the first convmix of every block.
        x = convmix_forward(x, blk['w1'], blk['b1'], pool=True)
        x = convmix_forward(x, blk['w2'], blk['b2'], pool=False)
    return head_forward(x, params['head_w'], params['head_b'], apk)


# --------------------------------------------------------------------------
# deterministic init (PyTorch-style) + BN folding + branch packing
# --------------------------------------------------------------------------

def _init_convmix_packed(key, idim, odim):
    """Init the four conv branches (Conv2d default init) and pack them into a
    single zero-padded 7x7 kernel; columns [b*a, (b+1)*a) hold branch b, which
    matches torch.cat((conv1, conv3, conv5, conv7), dim=1)."""
    assert odim % 4 == 0
    a = odim // 4
    w7 = jnp.zeros((7, 7, idim, odim), jnp.float32)
    bias = jnp.zeros((odim,), jnp.float32)
    for bi, (k, sub) in enumerate(zip((1, 3, 5, 7), jax.random.split(key, 4))):
        kw, kb = jax.random.split(sub)
        bound = 1.0 / float(idim * k * k) ** 0.5
        wk = jax.random.uniform(kw, (k, k, idim, a), jnp.float32, -bound, bound)
        bk = jax.random.uniform(kb, (a,), jnp.float32, -bound, bound)
        p = 3 - k // 2
        w7 = w7.at[p:p + k, p:p + k, :, bi * a:(bi + 1) * a].set(wk)
        bias = bias.at[bi * a:(bi + 1) * a].set(bk)
    return w7, bias


def _fold_bn(w7, bias, gamma=None, beta=None, mean=None, var=None, eps=1e-5):
    """Fold eval-mode BatchNorm2d into the conv weights/bias.  Defaults are the
    fresh-init identity stats (gamma=1, beta=0, mean=0, var=1); real running
    stats / affine params can be passed in for a trained model."""
    c = w7.shape[-1]
    gamma = jnp.ones((c,), jnp.float32) if gamma is None else gamma
    beta = jnp.zeros((c,), jnp.float32) if beta is None else beta
    mean = jnp.zeros((c,), jnp.float32) if mean is None else mean
    var = jnp.ones((c,), jnp.float32) if var is None else var
    scale = gamma / jnp.sqrt(var + eps)
    shift = beta - mean * scale
    return w7 * scale, bias * scale + shift


def _init_conv33(key, idim, odim):
    k1, k2 = jax.random.split(key)
    w1, b1 = _fold_bn(*_init_convmix_packed(k1, idim, odim))
    w2, b2 = _fold_bn(*_init_convmix_packed(k2, odim, odim))
    return {'w1': w1.astype(jnp.bfloat16), 'b1': b1.reshape(1, -1),
            'w2': w2.astype(jnp.bfloat16), 'b2': b2.reshape(1, -1)}


def init_label_block(key, idim, cla=2, maxidim=512):
    idimlist = []
    d = idim
    while d <= maxidim:
        idimlist.append(d)
        d *= 2
    keys = jax.random.split(key, len(idimlist) + 1)
    blocks = [_init_conv33(keys[i], d, 2 * d) for i, d in enumerate(idimlist)]
    bound = 1.0 / float(2 * maxidim) ** 0.5
    kw, kb = jax.random.split(keys[-1])
    head_w = jax.random.uniform(kw, (2 * maxidim, cla), jnp.float32, -bound, bound)
    head_b = jax.random.uniform(kb, (1, cla), jnp.float32, -bound, bound)
    return {'blocks': blocks, 'head_w': head_w, 'head_b': head_b}, len(idimlist)


# --------------------------------------------------------------------------
# plain-JAX references (f32) for correctness checks
# --------------------------------------------------------------------------

def _ref_maxpool(x):
    return jax.lax.reduce_window(x, -jnp.inf, jax.lax.max,
                                 (1, 2, 2, 1), (1, 2, 2, 1), 'VALID')


def _ref_convmix(x, w7_bf16, b):
    y = jax.lax.conv_general_dilated(
        x, w7_bf16.astype(jnp.float32), window_strides=(1, 1),
        padding=((3, 3), (3, 3)),
        dimension_numbers=('NHWC', 'HWIO', 'NHWC'),
        precision=jax.lax.Precision.HIGHEST)
    y = y + b.reshape(1, 1, 1, -1)
    return jnp.where(y >= 0, y, _LEAKY_SLOPE * y)


def _ref_forward(x_nchw, params, apk):
    x = jnp.transpose(x_nchw, (0, 2, 3, 1)).astype(jnp.float32)
    for blk in params['blocks']:
        x = _ref_maxpool(x)
        x = _ref_convmix(x, blk['w1'], blk['b1'])
        x = _ref_convmix(x, blk['w2'], blk['b2'])
    n, h, w, c = x.shape
    feat = jnp.mean(x.reshape(n, h * w, c), axis=1)
    logits = feat @ params['head_w'] + params['head_b']
    return jax.nn.softmax(logits, axis=-1)


# --------------------------------------------------------------------------
# main
# --------------------------------------------------------------------------

if __name__ == "__main__":
    # small config: label_block(idim=4, cla=2, maxidim=32)
    #   -> 4 conv33 blocks (4->8, 8->16, 16->32, 32->64 channels), AvgPool2d(1)
    idim, cla, maxidim = 4, 2, 32
    apk = int(16 / 512 * maxidim)
    assert apk >= 1, "maxidim too small: AvgPool2d kernel would be 0"

    key = jax.random.PRNGKey(0)
    kp, kx, ku = jax.random.split(key, 3)
    params, n_blocks = init_label_block(kp, idim, cla=cla, maxidim=maxidim)

    # Unit check 1: fused MaxPool2d(2) + convmix kernel vs reduce_window +
    # lax.conv_general_dilated with the same bf16 weights.
    w7u, bu = _fold_bn(*_init_convmix_packed(ku, 8, 16))
    xu = jax.random.normal(jax.random.fold_in(ku, 1), (2, 16, 16, 8), jnp.float32)
    got = convmix_forward(xu.astype(jnp.bfloat16), w7u.astype(jnp.bfloat16),
                          bu.reshape(1, -1), pool=True).astype(jnp.float32)
    want = _ref_convmix(_ref_maxpool(xu), w7u.astype(jnp.bfloat16), bu)
    assert bool(jnp.allclose(got, want, atol=5e-2, rtol=5e-2)), "pool+conv mismatch"

    # Unit check 2: non-pooled convmix kernel.
    xv = jax.random.normal(jax.random.fold_in(ku, 2), (2, 8, 8, 8), jnp.float32)
    got2 = convmix_forward(xv.astype(jnp.bfloat16), w7u.astype(jnp.bfloat16),
                           bu.reshape(1, -1), pool=False).astype(jnp.float32)
    want2 = _ref_convmix(xv, w7u.astype(jnp.bfloat16), bu)
    assert bool(jnp.allclose(got2, want2, atol=5e-2, rtol=5e-2)), "conv mismatch"

    # Full forward: spatial size must end at apk after n_blocks 2x max-pools.
    N, H, W = 2, apk * 2 ** n_blocks, apk * 2 ** n_blocks
    x = jax.random.normal(kx, (N, idim, H, W), jnp.float32)   # NCHW like PyTorch

    fwd = jax.jit(functools.partial(label_block_fwd, apk=apk))
    out = fwd(x, params)
    jax.block_until_ready(out)

    assert out.shape == (N, cla)
    assert bool(jnp.all(jnp.isfinite(out)))
    assert bool(jnp.allclose(jnp.sum(out, axis=1), 1.0, atol=1e-3))
    # end-to-end check against a plain-JAX f32 reference (kernels use bf16
    # activations -> generous tolerance on the probabilities)
    ref = _ref_forward(x, params, apk)
    assert bool(jnp.allclose(out, ref, atol=5e-2)), "forward mismatch vs reference"
    print("KERNEL_OK")
</pallas_src>

<mosaic_0001>
module attributes {stable_mosaic.version = 11 : i64} {
  func.func @_convmix_kernel(%arg0: i32, %arg1: i32, %arg2: memref<1x16x8x16xbf16, #tpu.memory_space<vmem>>, %arg3: memref<7x56x16xbf16, #tpu.memory_space<vmem>>, %arg4: memref<1x16xf32, #tpu.memory_space<vmem>>, %arg5: memref<1x64x16xbf16, #tpu.memory_space<vmem>>) attributes {dimension_semantics = [#tpu.dimension_semantics<parallel>, #tpu.dimension_semantics<parallel>], iteration_bounds = array<i64: 1, 2>, scalar_prefetch = 0 : i64, scratch_operands = 0 : i64, tpu.core_type = #tpu.core_type<tc>, window_params = [{transform_indices = @transform_0, window_bounds = array<i64: 1, 16, 8, 16>}, {transform_indices = @transform_1, window_bounds = array<i64: 7, 56, 16>}, {transform_indices = @transform_2, window_bounds = array<i64: 1, 16>}, {transform_indices = @transform_3, window_bounds = array<i64: 1, 64, 16>}]} {
    %c0 = arith.constant 0 : index
    %c0_0 = arith.constant 0 : index
    %c0_1 = arith.constant 0 : index
    %c0_2 = arith.constant 0 : index
    %0 = vector.load %arg2[%c0, %c0_0, %c0_1, %c0_2] : memref<1x16x8x16xbf16, #tpu.memory_space<vmem>>, vector<1x16x8x16xbf16>
    %1 = vector.shape_cast %0 : vector<1x16x8x16xbf16> to vector<16x8x16xbf16>
    %2 = vector.shape_cast %1 : vector<16x8x16xbf16> to vector<8x2x8x16xbf16>
    %3 = vector.extract_strided_slice %2 {offsets = [0, 0, 0, 0], sizes = [8, 1, 8, 16], strides = [1, 1, 1, 1]} : vector<8x2x8x16xbf16> to vector<8x1x8x16xbf16>
    %4 = vector.shape_cast %3 : vector<8x1x8x16xbf16> to vector<8x8x16xbf16>
    %5 = vector.extract_strided_slice %2 {offsets = [0, 1, 0, 0], sizes = [8, 1, 8, 16], strides = [1, 1, 1, 1]} : vector<8x2x8x16xbf16> to vector<8x1x8x16xbf16>
    %6 = vector.shape_cast %5 : vector<8x1x8x16xbf16> to vector<8x8x16xbf16>
    %7 = arith.maximumf %4, %6 : vector<8x8x16xbf16>
    %8 = vector.extract_strided_slice %7 {offsets = [0, 0, 0], sizes = [8, 8, 8], strides = [1, 1, 1]} : vector<8x8x16xbf16> to vector<8x8x8xbf16>
    %9 = vector.extract_strided_slice %7 {offsets = [0, 0, 8], sizes = [8, 8, 8], strides = [1, 1, 1]} : vector<8x8x16xbf16> to vector<8x8x8xbf16>
    %10 = arith.maximumf %8, %9 : vector<8x8x8xbf16>
    %cst = arith.constant 0.000000e+00 : bf16
    %11 = vector.broadcast %cst : bf16 to vector<8x3x8xbf16>
    %12 = tpu.concatenate %11, %10, %11 in 1 : vector<8x3x8xbf16>, vector<8x8x8xbf16>, vector<8x3x8xbf16> -> vector<8x14x8xbf16>
    %cst_3 = arith.constant 0.000000e+00 : bf16
    %13 = vector.broadcast %cst_3 : bf16 to vector<3x14x8xbf16>
    %14 = tpu.concatenate %13, %12, %13 in 0 : vector<3x14x8xbf16>, vector<8x14x8xbf16>, vector<3x14x8xbf16> -> vector<14x14x8xbf16>
    %15 = vector.extract_strided_slice %14 {offsets = [0, 0, 0], sizes = [14, 8, 8], strides = [1, 1, 1]} : vector<14x14x8xbf16> to vector<14x8x8xbf16>
    %16 = vector.extract_strided_slice %14 {offsets = [0, 1, 0], sizes = [14, 8, 8], strides = [1, 1, 1]} : vector<14x14x8xbf16> to vector<14x8x8xbf16>
    %17 = vector.extract_strided_slice %14 {offsets = [0, 2, 0], sizes = [14, 8, 8], strides = [1, 1, 1]} : vector<14x14x8xbf16> to vector<14x8x8xbf16>
    %18 = vector.extract_strided_slice %14 {offsets = [0, 3, 0], sizes = [14, 8, 8], strides = [1, 1, 1]} : vector<14x14x8xbf16> to vector<14x8x8xbf16>
    %19 = vector.extract_strided_slice %14 {offsets = [0, 4, 0], sizes = [14, 8, 8], strides = [1, 1, 1]} : vector<14x14x8xbf16> to vector<14x8x8xbf16>
    %20 = vector.extract_strided_slice %14 {offsets = [0, 5, 0], sizes = [14, 8, 8], strides = [1, 1, 1]} : vector<14x14x8xbf16> to vector<14x8x8xbf16>
    %21 = vector.extract_strided_slice %14 {offsets = [0, 6, 0], sizes = [14, 8, 8], strides = [1, 1, 1]} : vector<14x14x8xbf16> to vector<14x8x8xbf16>
    %22 = tpu.concatenate %15, %16, %17, %18, %19, %20, %21 in 2 : vector<14x8x8xbf16>, vector<14x8x8xbf16>, vector<14x8x8xbf16>, vector<14x8x8xbf16>, vector<14x8x8xbf16>, vector<14x8x8xbf16>, vector<14x8x8xbf16> -> vector<14x8x56xbf16>
    %23 = vector.shape_cast %22 : vector<14x8x56xbf16> to vector<112x56xbf16>
    %cst_4 = arith.constant 0.000000e+00 : f32
    %24 = vector.broadcast %cst_4 : f32 to vector<64x16xf32>
    %25 = vector.extract_strided_slice %23 {offsets = [0, 0], sizes = [64, 56], strides = [1, 1]} : vector<112x56xbf16> to vector<64x56xbf16>
    %c0_5 = arith.constant 0 : index
    %c0_6 = arith.constant 0 : index
    %c0_7 = arith.constant 0 : index
    %26 = vector.load %arg3[%c0_5, %c0_6, %c0_7] : memref<7x56x16xbf16, #tpu.memory_space<vmem>>, vector<1x56x16xbf16>
    %27 = vector.shape_cast %26 : vector<1x56x16xbf16> to vector<56x16xbf16>
    %cst_8 = arith.constant dense<0.000000e+00> : vector<64x16xf32>
    %28 = tpu.matmul %25, %27, %cst_8 {dimension_numbers = #tpu.dot_dimension_numbers<[1], [0], [0], [1], [0, 0, 1, 1], [], []>} : vector<64x56xbf16>, vector<56x16xbf16>, vector<64x16xf32> -> vector<64x16xf32>
    %29 = arith.addf %24, %28 : vector<64x16xf32>
    %30 = vector.extract_strided_slice %23 {offsets = [8, 0], sizes = [64, 56], strides = [1, 1]} : vector<112x56xbf16> to vector<64x56xbf16>
    %c1 = arith.constant 1 : index
    %c0_9 = arith.constant 0 : index
    %c0_10 = arith.constant 0 : index
    %31 = vector.load %arg3[%c1, %c0_9, %c0_10] : memref<7x56x16xbf16, #tpu.memory_space<vmem>>, vector<1x56x16xbf16>
    %32 = vector.shape_cast %31 : vector<1x56x16xbf16> to vector<56x16xbf16>
    %cst_11 = arith.constant dense<0.000000e+00> : vector<64x16xf32>
    %33 = tpu.matmul %30, %32, %cst_11 {dimension_numbers = #tpu.dot_dimension_numbers<[1], [0], [0], [1], [0, 0, 1, 1], [], []>} : vector<64x56xbf16>, vector<56x16xbf16>, vector<64x16xf32> -> vector<64x16xf32>
    %34 = arith.addf %29, %33 : vector<64x16xf32>
    %35 = vector.extract_strided_slice %23 {offsets = [16, 0], sizes = [64, 56], strides = [1, 1]} : vector<112x56xbf16> to vector<64x56xbf16>
    %c2 = arith.constant 2 : index
    %c0_12 = arith.constant 0 : index
    %c0_13 = arith.constant 0 : index
    %36 = vector.load %arg3[%c2, %c0_12, %c0_13] : memref<7x56x16xbf16, #tpu.memory_space<vmem>>, vector<1x56x16xbf16>
    %37 = vector.shape_cast %36 : vector<1x56x16xbf16> to vector<56x16xbf16>
    %cst_14 = arith.constant dense<0.000000e+00> : vector<64x16xf32>
    %38 = tpu.matmul %35, %37, %cst_14 {dimension_numbers = #tpu.dot_dimension_numbers<[1], [0], [0], [1], [0, 0, 1, 1], [], []>} : vector<64x56xbf16>, vector<56x16xbf16>, vector<64x16xf32> -> vector<64x16xf32>
    %39 = arith.addf %34, %38 : vector<64x16xf32>
    %40 = vector.extract_strided_slice %23 {offsets = [24, 0], sizes = [64, 56], strides = [1, 1]} : vector<112x56xbf16> to vector<64x56xbf16>
    %c3 = arith.constant 3 : index
    %c0_15 = arith.constant 0 : index
    %c0_16 = arith.constant 0 : index
    %41 = vector.load %arg3[%c3, %c0_15, %c0_16] : memref<7x56x16xbf16, #tpu.memory_space<vmem>>, vector<1x56x16xbf16>
    %42 = vector.shape_cast %41 : vector<1x56x16xbf16> to vector<56x16xbf16>
    %cst_17 = arith.constant dense<0.000000e+00> : vector<64x16xf32>
    %43 = tpu.matmul %40, %42, %cst_17 {dimension_numbers = #tpu.dot_dimension_numbers<[1], [0], [0], [1], [0, 0, 1, 1], [], []>} : vector<64x56xbf16>, vector<56x16xbf16>, vector<64x16xf32> -> vector<64x16xf32>
    %44 = arith.addf %39, %43 : vector<64x16xf32>
    %45 = vector.extract_strided_slice %23 {offsets = [32, 0], sizes = [64, 56], strides = [1, 1]} : vector<112x56xbf16> to vector<64x56xbf16>
    %c4 = arith.constant 4 : index
    %c0_18 = arith.constant 0 : index
    %c0_19 = arith.constant 0 : index
    %46 = vector.load %arg3[%c4, %c0_18, %c0_19] : memref<7x56x16xbf16, #tpu.memory_space<vmem>>, vector<1x56x16xbf16>
    %47 = vector.shape_cast %46 : vector<1x56x16xbf16> to vector<56x16xbf16>
    %cst_20 = arith.constant dense<0.000000e+00> : vector<64x16xf32>
    %48 = tpu.matmul %45, %47, %cst_20 {dimension_numbers = #tpu.dot_dimension_numbers<[1], [0], [0], [1], [0, 0, 1, 1], [], []>} : vector<64x56xbf16>, vector<56x16xbf16>, vector<64x16xf32> -> vector<64x16xf32>
    %49 = arith.addf %44, %48 : vector<64x16xf32>
    %50 = vector.extract_strided_slice %23 {offsets = [40, 0], sizes = [64, 56], strides = [1, 1]} : vector<112x56xbf16> to vector<64x56xbf16>
    %c5 = arith.constant 5 : index
    %c0_21 = arith.constant 0 : index
    %c0_22 = arith.constant 0 : index
    %51 = vector.load %arg3[%c5, %c0_21, %c0_22] : memref<7x56x16xbf16, #tpu.memory_space<vmem>>, vector<1x56x16xbf16>
    %52 = vector.shape_cast %51 : vector<1x56x16xbf16> to vector<56x16xbf16>
    %cst_23 = arith.constant dense<0.000000e+00> : vector<64x16xf32>
    %53 = tpu.matmul %50, %52, %cst_23 {dimension_numbers = #tpu.dot_dimension_numbers<[1], [0], [0], [1], [0, 0, 1, 1], [], []>} : vector<64x56xbf16>, vector<56x16xbf16>, vector<64x16xf32> -> vector<64x16xf32>
    %54 = arith.addf %49, %53 : vector<64x16xf32>
    %55 = vector.extract_strided_slice %23 {offsets = [48, 0], sizes = [64, 56], strides = [1, 1]} : vector<112x56xbf16> to vector<64x56xbf16>
    %c6 = arith.constant 6 : index
    %c0_24 = arith.constant 0 : index
    %c0_25 = arith.constant 0 : index
    %56 = vector.load %arg3[%c6, %c0_24, %c0_25] : memref<7x56x16xbf16, #tpu.memory_space<vmem>>, vector<1x56x16xbf16>
    %57 = vector.shape_cast %56 : vector<1x56x16xbf16> to vector<56x16xbf16>
    %cst_26 = arith.constant dense<0.000000e+00> : vector<64x16xf32>
    %58 = tpu.matmul %55, %57, %cst_26 {dimension_numbers = #tpu.dot_dimension_numbers<[1], [0], [0], [1], [0, 0, 1, 1], [], []>} : vector<64x56xbf16>, vector<56x16xbf16>, vector<64x16xf32> -> vector<64x16xf32>
    %59 = arith.addf %54, %58 : vector<64x16xf32>
    %c0_27 = arith.constant 0 : index
    %c0_28 = arith.constant 0 : index
    %60 = vector.load %arg4[%c0_27, %c0_28] : memref<1x16xf32, #tpu.memory_space<vmem>>, vector<1x16xf32>
    %61 = vector.broadcast %60 : vector<1x16xf32> to vector<64x16xf32>
    %62 = arith.addf %59, %61 : vector<64x16xf32>
    %cst_29 = arith.constant 0.000000e+00 : f32
    %63 = vector.broadcast %cst_29 : f32 to vector<64x16xf32>
    %64 = arith.cmpf oge, %62, %63 : vector<64x16xf32>
    %cst_30 = arith.constant 0.00999999977 : f32
    %65 = vector.broadcast %cst_30 : f32 to vector<64x16xf32>
    %66 = arith.mulf %65, %62 : vector<64x16xf32>
    %67 = arith.select %64, %62, %66 : vector<64x16xi1>, vector<64x16xf32>
    %68 = arith.truncf %67 : vector<64x16xf32> to vector<64x16xbf16>
    %c0_31 = arith.constant 0 : index
    %c0_32 = arith.constant 0 : index
    %c0_33 = arith.constant 0 : index
    %69 = vector.load %arg5[%c0_31, %c0_32, %c0_33] : memref<1x64x16xbf16, #tpu.memory_space<vmem>>, vector<1x64x16xbf16>
    %70 = vector.shape_cast %69 : vector<1x64x16xbf16> to vector<64x16xbf16>
    %71 = vector.shape_cast %68 : vector<64x16xbf16> to vector<1x64x16xbf16>
    tpu.vector_store %arg5[%c0_31, %c0_32, %c0_33], %71 {strides = array<i32>} : memref<1x64x16xbf16, #tpu.memory_space<vmem>>, vector<1x64x16xbf16>,
    return
  }
  func.func @transform_0(%arg0: i32, %arg1: i32) -> (i32, i32, i32, i32) {
    %c0_i32 = arith.constant 0 : i32
    %c0_i32_0 = arith.constant 0 : i32
    %c0_i32_1 = arith.constant 0 : i32
    %c0_i32_2 = arith.constant 0 : i32
    return %arg1, %c0_i32, %c0_i32_0, %c0_i32_1 : i32, i32, i32, i32
  }
  func.func @transform_1(%arg0: i32, %arg1: i32) -> (i32, i32, i32) {
    %c0_i32 = arith.constant 0 : i32
    %c0_i32_0 = arith.constant 0 : i32
    %c0_i32_1 = arith.constant 0 : i32
    return %c0_i32, %c0_i32_0, %arg0 : i32, i32, i32
  }
  func.func @transform_2(%arg0: i32, %arg1: i32) -> (i32, i32) {
    %c0_i32 = arith.constant 0 : i32
    %c0_i32_0 = arith.constant 0 : i32
    return %c0_i32, %arg0 : i32, i32
  }
  func.func @transform_3(%arg0: i32, %arg1: i32) -> (i32, i32, i32) {
    %c0_i32 = arith.constant 0 : i32
    %c0_i32_0 = arith.constant 0 : i32
    return %arg1, %c0_i32, %arg0 : i32, i32, i32
  }
}

</mosaic_0001>

<llo_original>
// kernel: tpu_custom_call.1
$region0: #{tpu_custom_call.1}
  #allocation0 [shape = 'u32[]', space=smem, size = 0x4, offset = 0x4, fixed_abs, tag = 'smem constant byte address 0x4 - core index']
  #allocation1 [shape = 'u32[144,128]{1,0:T(1,128)}', space=vmem, size = 0x12000, scoped, tag = 'internal scratch']
  %s0 = inlined_call_operand.vmem [shape: bf16[2,16,8,16], index: 0, kind: input, shape index: {}]
  %s1 = inlined_call_operand.vmem [shape: bf16[7,56,16], index: 1, kind: input, shape index: {}]
  %s2 = inlined_call_operand.vmem [shape: f32[1,16], index: 2, kind: input, shape index: {}]
  %s3 = inlined_call_operand.vmem [shape: bf16[2,64,16], index: 3, kind: output, shape index: {}]
  %s4 = sld [smem:[#allocation0]]
  $region45: #{tpu_custom_call.1} parent=0
    _
  %s6 = ssub.s32 1, %s4
  %s7 = scalar_select 0, %s6, %s4
  loop: start=0, step=1, limit=4
  $region2: #{tpu_custom_call.1} parent=0 // loop_pre_header
    _
  $region3: #{tpu_custom_call.1} parent=0 // loop_header
    %s9 = sphi 0, %s13
    %p10 = scmp.ge.s32.totalorder %s9, 4
    %s16 = sphi 0, %s28
    %s17 = sphi 0, %s24
    %s18 = sphi 0, %s16
    %s19 = sphi 0, %s17
    %s20 = sphi 0, %s18
    %s21 = sphi 0, %s19
    %s31 = sphi 0, %s33
    %s34 = sphi 0, %s31
    %s35 = sphi 0, %s34
    %s51 = sphi 0, %s35
    %s57 = sphi 0, %s59
    %s60 = sphi 0, %s57
    %s61 = sphi 0, %s60
    %s77 = sphi 0, %s61
    %s83 = sphi 0, %s85
    %s86 = sphi 0, %s83
    %s87 = sphi 0, %s86
    %s103 = sphi 0, %s87
    %s111 = sphi 0, %s113
    %s114 = sphi 0, %s111
    %s115 = sphi 0, %s114
    %s131 = sphi 0, %s115
  $region4: #{tpu_custom_call.1} parent=0 // loop_header_branch
    %12 = sbr.rel (%p10) target = $region8
  $region5: #{tpu_custom_call.1} parent=0 // loop_body
    %s14 = ssub.s32 %s9, 1
    %s15 = ssub.s32 %s9, 2
    %s22 = sadd.s32 1, %s17
    %p23 = scmp.ge.s32.totalorder %s22, 2
    %s24 = scalar_select %p23, 0, %s22
    %s25 = sadd.s32 1, %s16
    %s26 = scalar_select %p23, %s25, %s16
    %p27 = scmp.ge.s32.totalorder %s26, 1
    %s28 = scalar_select %p27, 0, %s26
    %s29 = ssub.s32 %s17, %s24
    %p30 = scmp.eq.s32.totalorder %s29, 0
    %s32 = sadd.s32 %s31, 1
    %s33 = scalar_select %p30, %s31, %s32
    %p36 = pneg %p30
    %p37 = scmp.eq.s32.totalorder %s9, 1
    %p38 = por %p36, %p37
    %p39 = scmp.ne.s32.totalorder %s31, %s34
    %p40 = scmp.eq.s32.totalorder %s9, 0
    %p41 = por %p39, %p40
    %p42 = scmp.ne.s32.totalorder %s31, %s34
    %p43 = scmp.eq.s32.totalorder %s14, 1
    %p44 = por %p42, %p43
    %p45 = scmp.ne.s32.totalorder %s34, %s35
    %p46 = scmp.eq.s32.totalorder %s14, 0
    %p47 = por %p45, %p46
    %p48 = scmp.ne.s32.totalorder %s34, %s35
    %p49 = scmp.eq.s32.totalorder %s15, 1
    %p50 = por %p48, %p49
    %p52 = scmp.ne.s32.totalorder %s35, %s51
    %p53 = scmp.eq.s32.totalorder %s15, 0
    %p54 = por %p52, %p53
    %s55 = ssub.s32 %s16, %s28
    %p56 = scmp.eq.s32.totalorder %s55, 0
    %s58 = sadd.s32 %s57, 1
    %s59 = scalar_select %p56, %s57, %s58
    %p62 = pneg %p56
    %p63 = scmp.eq.s32.totalorder %s9, 1
    %p64 = por %p62, %p63
    %p65 = scmp.ne.s32.totalorder %s57, %s60
    %p66 = scmp.eq.s32.totalorder %s9, 0
    %p67 = por %p65, %p66
    %p68 = scmp.ne.s32.totalorder %s57, %s60
    %p69 = scmp.eq.s32.totalorder %s14, 1
    %p70 = por %p68, %p69
    %p71 = scmp.ne.s32.totalorder %s60, %s61
    %p72 = scmp.eq.s32.totalorder %s14, 0
    %p73 = por %p71, %p72
    %p74 = scmp.ne.s32.totalorder %s60, %s61
    %p75 = scmp.eq.s32.totalorder %s15, 1
    %p76 = por %p74, %p75
    %p78 = scmp.ne.s32.totalorder %s61, %s77
    %p79 = scmp.eq.s32.totalorder %s15, 0
    %p80 = por %p78, %p79
    %s81 = ssub.s32 %s16, %s28
    %p82 = scmp.eq.s32.totalorder %s81, 0
    %s84 = sadd.s32 %s83, 1
    %s85 = scalar_select %p82, %s83, %s84
    %p88 = pneg %p82
    %p89 = scmp.eq.s32.totalorder %s9, 1
    %p90 = por %p88, %p89
    %p91 = scmp.ne.s32.totalorder %s83, %s86
    %p92 = scmp.eq.s32.totalorder %s9, 0
    %p93 = por %p91, %p92
    %p94 = scmp.ne.s32.totalorder %s83, %s86
    %p95 = scmp.eq.s32.totalorder %s14, 1
    %p96 = por %p94, %p95
    %p97 = scmp.ne.s32.totalorder %s86, %s87
    %p98 = scmp.eq.s32.totalorder %s14, 0
    %p99 = por %p97, %p98
    %p100 = scmp.ne.s32.totalorder %s86, %s87
    %p101 = scmp.eq.s32.totalorder %s15, 1
    %p102 = por %p100, %p101
    %p104 = scmp.ne.s32.totalorder %s87, %s103
    %p105 = scmp.eq.s32.totalorder %s15, 0
    %p106 = por %p104, %p105
    %s107 = ssub.s32 %s17, %s24
    %s108 = ssub.s32 %s16, %s28
    %s109 = sor.u32 %s107, %s108
    %p110 = scmp.eq.s32.totalorder %s109, 0
    %s112 = sadd.s32 %s111, 1
    %s113 = scalar_select %p110, %s111, %s112
    %p116 = pneg %p110
    %p117 = scmp.eq.s32.totalorder %s9, 1
    %p118 = por %p116, %p117
    %p119 = scmp.ne.s32.totalorder %s111, %s114
    %p120 = scmp.eq.s32.totalorder %s9, 0
    %p121 = por %p119, %p120
    %p122 = scmp.ne.s32.totalorder %s111, %s114
    %p123 = scmp.eq.s32.totalorder %s14, 1
    %p124 = por %p122, %p123
    %p125 = scmp.ne.s32.totalorder %s114, %s115
    %p126 = scmp.eq.s32.totalorder %s14, 0
    %p127 = por %p125, %p126
    %p128 = scmp.ne.s32.totalorder %s114, %s115
    %p129 = scmp.eq.s32.totalorder %s15, 1
    %p130 = por %p128, %p129
    %p132 = scmp.ne.s32.totalorder %s115, %s131
    %p133 = scmp.eq.s32.totalorder %s15, 0
    %p134 = por %p132, %p133
    %p135 = scmp.le.s32.totalorder 1, %s9
    %p136 = scmp.lt.s32.totalorder %s9, 3
    %p137 = pnand %p135, %p136
    %p138 = pneg %p137
    // Predicated region
    $region9: #{tpu_custom_call.1} parent=5 // pred_check
      _
    $region10: #{tpu_custom_call.1} parent=5 // pred_check_branch
      %140 = sbr.rel (%p137) target = $region12
    $region11: #{tpu_custom_call.1} parent=5 // pred_region
      %s141 = ssub.s32 %s9, 1
      // Predicated region
      $region13: #{tpu_custom_call.1} parent=11 // pred_check
        %p142 = pneg %p73
      $region14: #{tpu_custom_call.1} parent=11 // pred_check_branch
        %144 = sbr.rel (%p142) target = $region16
      $region15: #{tpu_custom_call.1} parent=11 // pred_region
        %p145 = scmp.lt.s32.totalorder %s18, 0
        %s146 = scalar_select %p145, %s18, 0
        %s147 = smul.addr %s146, 4
        %s148 = scalar_lea.vmem %s1, %s147
      $region16: #{tpu_custom_call.1} parent=11 // pred_fallthru
        _
      // Predicated region
      $region17: #{tpu_custom_call.1} parent=11 // pred_check
        %p149 = pneg %p99
      $region18: #{tpu_custom_call.1} parent=11 // pred_check_branch
        %151 = sbr.rel (%p149) target = $region20
      $region19: #{tpu_custom_call.1} parent=11 // pred_region
        %p152 = scmp.lt.s32.totalorder %s18, 0
        %s153 = scalar_select %p152, %s18, 0
        %s154 = scalar_lea.vmem %s2, %s153
      $region20: #{tpu_custom_call.1} parent=11 // pred_fallthru
        _
    $region12: #{tpu_custom_call.1} parent=5 // pred_fallthru
      _
    %p155 = scmp.lt.s32.totalorder %s9, 2
    // Predicated region
    $region21: #{tpu_custom_call.1} parent=5 // pred_check
      %p156 = pneg %p155
    $region22: #{tpu_custom_call.1} parent=5 // pred_check_branch
      %158 = sbr.rel (%p156) target = $region24
    $region23: #{tpu_custom_call.1} parent=5 // pred_region
      // Predicated region
      $region25: #{tpu_custom_call.1} parent=23 // pred_check
        %p159 = pneg %p41
      $region26: #{tpu_custom_call.1} parent=23 // pred_check_branch
        %161 = sbr.rel (%p159) target = $region28
      $region27: #{tpu_custom_call.1} parent=23 // pred_region
        %p162 = scmp.lt.s32.totalorder %s17, 1
        %s163 = scalar_select %p162, %s17, 1
        %s164 = smul.addr %s163, 16
        %s165 = smul.addr %s164, 4
        %s166 = scalar_lea.vmem %s0, %s165
      $region28: #{tpu_custom_call.1} parent=23 // pred_fallthru
        _
    $region24: #{tpu_custom_call.1} parent=5 // pred_fallthru
      _
    %p167 = scmp.le.s32.totalorder 1, %s9
    %p168 = scmp.lt.s32.totalorder %s9, 3
    %p169 = pnand %p167, %p168
    %p170 = pneg %p169
    // Predicated region
    $region29: #{tpu_custom_call.1} parent=5 // pred_check
      _
    $region30: #{tpu_custom_call.1} parent=5 // pred_check_branch
      %172 = sbr.rel (%p169) target = $region32
    $region31: #{tpu_custom_call.1} parent=5 // pred_region
      %s173 = ssub.s32 %s9, 1
      %p174 = scmp.lt.s32.totalorder %s19, 1
      %s175 = scalar_select %p174, %s19, 1
      %s176 = smul.addr %s175, 16
      %s177 = smul.addr %s176, 4
      %s178 = scalar_lea.vmem %s0, %s177
      %p179 = pneg %p47
      %p180 = pneg %p44
      %p181 = scmp.lt.s32.totalorder %s18, 0
      %s182 = scalar_select %p181, %s18, 0
      %s183 = smul.addr %s182, 4
      %s184 = scalar_lea.vmem %s1, %s183
      %p185 = pneg %p73
      %p186 = pneg %p70
      %p187 = scmp.lt.s32.totalorder %s18, 0
      %s188 = scalar_select %p187, %s18, 0
      %s189 = scalar_lea.vmem %s2, %s188
      %p190 = pneg %p99
      %p191 = pneg %p96
      %p192 = pneg %p127
      %p193 = pneg %p124
      %p194 = scmp.lt.s32.totalorder %s19, 1
      %s195 = scalar_select %p194, %s19, 1
      %p196 = scmp.lt.s32.totalorder %s18, 0
      %s197 = scalar_select %p196, %s18, 0
      %s198 = smul.addr %s195, 8
      %s199 = sadd.s32 %s197, %s198
      %s200 = smul.addr %s199, 4
      %s201 = scalar_lea.vmem %s3, %s200
      %p202 = scmp.lt.s32.totalorder %s19, 1
      %s203 = scalar_select %p202, %s19, 1
      %s204 = smul.addr %s203, 16
      %s205 = smul.addr %s204, 4
      %s206 = scalar_lea.vmem %s0, %s205
      %p207 = scmp.lt.s32.totalorder %s18, 0
      %s208 = scalar_select %p207, %s18, 0
      %s209 = smul.addr %s208, 4
      %s210 = scalar_lea.vmem %s1, %s209
      %p211 = scmp.lt.s32.totalorder %s18, 0
      %s212 = scalar_select %p211, %s18, 0
      %s213 = scalar_lea.vmem %s2, %s212
      %p214 = scmp.lt.s32.totalorder %s19, 1
      %s215 = scalar_select %p214, %s19, 1
      %p216 = scmp.lt.s32.totalorder %s18, 0
      %s217 = scalar_select %p216, %s18, 0
      %s218 = smul.addr %s215, 8
      %s219 = sadd.s32 %s217, %s218
      %s220 = smul.addr %s219, 4
      %s221 = scalar_lea.vmem %s3, %s220
      %v223 = vld [vmem:[%s206] sm:$0xf]
      %v224 = vld [vmem:[%s206 + $0x4] sm:$0xf]
      %v225 = vld [vmem:[%s206 + $0x8] sm:$0xf]
      %v226 = vld [vmem:[%s206 + $0xc] sm:$0xf]
      %v227 = vld [vmem:[%s206 + $0x10] sm:$0xf]
      %v228 = vld [vmem:[%s206 + $0x14] sm:$0xf]
      %v229 = vld [vmem:[%s206 + $0x18] sm:$0xf]
      %v230 = vld [vmem:[%s206 + $0x1c] sm:$0xf]
      %v231 = vld [vmem:[%s206 + $0x20] sm:$0xf]
      %v232 = vld [vmem:[%s206 + $0x24] sm:$0xf]
      %v233 = vld [vmem:[%s206 + $0x28] sm:$0xf]
      %v234 = vld [vmem:[%s206 + $0x2c] sm:$0xf]
      %v235 = vld [vmem:[%s206 + $0x30] sm:$0xf]
      %v236 = vld [vmem:[%s206 + $0x34] sm:$0xf]
      %v237 = vld [vmem:[%s206 + $0x38] sm:$0xf]
      %v238 = vld [vmem:[%s206 + $0x3c] sm:$0xf]
      %v239 = vmax.bf16 %v223, %v224
      %v240 = vmax.bf16 %v225, %v226
      %v241 = vmax.bf16 %v227, %v228
      %v242 = vmax.bf16 %v229, %v230
      %v243 = vmax.bf16 %v231, %v232
      %v244 = vmax.bf16 %v233, %v234
      %v245 = vmax.bf16 %v235, %v236
      %v246 = vmax.bf16 %v237, %v238
      %255 = vrot.lane.b32.xlu0 %v239, 120
      %v256 = vpop.permute.xlu0 %255
      %257 = vrot.lane.b32.xlu0 %v240, 120
      %v258 = vpop.permute.xlu0 %257
      %259 = vrot.lane.b32.xlu0 %v241, 120
      %v260 = vpop.permute.xlu0 %259
      %261 = vrot.lane.b32.xlu0 %v242, 120
      %v262 = vpop.permute.xlu0 %261
      %263 = vrot.lane.b32.xlu0 %v243, 120
      %v264 = vpop.permute.xlu0 %263
      %265 = vrot.lane.b32.xlu0 %v244, 120
      %v266 = vpop.permute.xlu0 %265
      %267 = vrot.lane.b32.xlu0 %v245, 120
      %v268 = vpop.permute.xlu0 %267
      %269 = vrot.lane.b32.xlu0 %v246, 120
      %v270 = vpop.permute.xlu0 %269
      %v279 = vmax.bf16 %v239, %v256
      %v280 = vmax.bf16 %v240, %v258
      %v281 = vmax.bf16 %v241, %v260
      %v282 = vmax.bf16 %v242, %v262
      %v283 = vmax.bf16 %v243, %v264
      %v284 = vmax.bf16 %v244, %v266
      %v285 = vmax.bf16 %v245, %v268
      %v286 = vmax.bf16 %v246, %v270
      %v295 = vunpack.c.l.b16 %v279
      %v296 = vunpack.c.l.b16 %v280
      %v297 = vunpack.c.l.b16 %v281
      %v298 = vunpack.c.l.b16 %v282
      %v299 = vunpack.c.l.b16 %v283
      %v300 = vunpack.c.l.b16 %v284
      %v301 = vunpack.c.l.b16 %v285
      %v302 = vunpack.c.l.b16 %v286
      %v303 = vpack.c.b16 %v295, %v295
      %v304 = vpack.c.b16 %v296, %v296
      %v305 = vpack.c.b16 %v297, %v297
      %v306 = vpack.c.b16 %v298, %v298
      %v307 = vpack.c.b16 %v299, %v299
      %v308 = vpack.c.b16 %v300, %v300
      %v309 = vpack.c.b16 %v301, %v301
      %v310 = vpack.c.b16 %v302, %v302
      %v312 = vshrl.u32 %v303, 16
      %v314 = vrot.slane %v312, 6
      %v315 = vshll.u32 %v303, 16
      %v317 = vrot.slane %v315, 7
      %v318 = vor.u32 %v314, %v317
      %v320 = vshrl.u32 %v304, 16
      %v322 = vrot.slane %v320, 6
      %v323 = vshll.u32 %v304, 16
      %v325 = vrot.slane %v323, 7
      %v326 = vor.u32 %v322, %v325
      %v328 = vshrl.u32 %v305, 16
      %v330 = vrot.slane %v328, 6
      %v331 = vshll.u32 %v305, 16
      %v333 = vrot.slane %v331, 7
      %v334 = vor.u32 %v330, %v333
      %v336 = vshrl.u32 %v306, 16
      %v338 = vrot.slane %v336, 6
      %v339 = vshll.u32 %v306, 16
      %v341 = vrot.slane %v339, 7
      %v342 = vor.u32 %v338, %v341
      %v344 = vshrl.u32 %v307, 16
      %v346 = vrot.slane %v344, 6
      %v347 = vshll.u32 %v307, 16
      %v349 = vrot.slane %v347, 7
      %v350 = vor.u32 %v346, %v349
      %v352 = vshrl.u32 %v308, 16
      %v354 = vrot.slane %v352, 6
      %v355 = vshll.u32 %v308, 16
      %v357 = vrot.slane %v355, 7
      %v358 = vor.u32 %v354, %v357
      %v360 = vshrl.u32 %v309, 16
      %v362 = vrot.slane %v360, 6
      %v363 = vshll.u32 %v309, 16
      %v365 = vrot.slane %v363, 7
      %v366 = vor.u32 %v362, %v365
      %v368 = vshrl.u32 %v310, 16
      %v370 = vrot.slane %v368, 6
      %v371 = vshll.u32 %v310, 16
      %v373 = vrot.slane %v371, 7
      %v374 = vor.u32 %v370, %v373
      %vm383 = vcmask 1041408
      %vm384 = vsmask.f32 1280
      %vm385 = vmand %vm383, %vm384
      %v386 = vsel %vm385, 0, %v318
      %v387 = vsel %vm385, 0, %v326
      %v388 = vsel %vm385, 0, %v334
      %v389 = vsel %vm385, 0, %v342
      %v390 = vsel %vm385, 0, %v350
      %v391 = vsel %vm385, 0, %v358
      %v392 = vsel %vm385, 0, %v366
      %v393 = vsel %vm385, 0, %v374
      %vm394 = vcmask 1045504
      %vm395 = vsmask.f32 5376
      %vm396 = vmand %vm394, %vm395
      %v397 = vsel %vm396, %v386, 0
      %v398 = vsel %vm396, %v387, 0
      %v399 = vsel %vm396, %v388, 0
      %v400 = vsel %vm396, %v389, 0
      %v401 = vsel %vm396, %v390, 0
      %v402 = vsel %vm396, %v391, 0
      %v403 = vsel %vm396, %v392, 0
      %v404 = vsel %vm396, %v393, 0
      %v406 = vshrl.u32 0, 16
      %v408 = vshll.u32 0, 16
      %v410 = vrot.slane %v408, 1
      %v411 = vor.u32 %v406, %v410
      %v413 = vshrl.u32 %v397, 16
      %v415 = vshll.u32 %v397, 16
      %v417 = vrot.slane %v415, 1
      %v418 = vor.u32 %v413, %v417
      %v420 = vshrl.u32 %v398, 16
      %v422 = vshll.u32 %v398, 16
      %v424 = vrot.slane %v422, 1
      %v425 = vor.u32 %v420, %v424
      %v427 = vshrl.u32 %v399, 16
      %v429 = vshll.u32 %v399, 16
      %v431 = vrot.slane %v429, 1
      %v432 = vor.u32 %v427, %v431
      %v434 = vshrl.u32 %v400, 16
      %v436 = vshll.u32 %v400, 16
      %v438 = vrot.slane %v436, 1
      %v439 = vor.u32 %v434, %v438
      %v441 = vshrl.u32 %v401, 16
      %v443 = vshll.u32 %v401, 16
      %v445 = vrot.slane %v443, 1
      %v446 = vor.u32 %v441, %v445
      %v448 = vshrl.u32 %v402, 16
      %v450 = vshll.u32 %v402, 16
      %v452 = vrot.slane %v450, 1
      %v453 = vor.u32 %v448, %v452
      %v455 = vshrl.u32 %v403, 16
      %v457 = vshll.u32 %v403, 16
      %v459 = vrot.slane %v457, 1
      %v460 = vor.u32 %v455, %v459
      %v462 = vshrl.u32 %v404, 16
      %v464 = vshll.u32 %v404, 16
      %v466 = vrot.slane %v464, 1
      %v467 = vor.u32 %v462, %v466
      %468 = vrot.lane.b32.xlu0 %v411, 8
      %v469 = vpop.permute.xlu0 %468
      %470 = vrot.lane.b32.xlu0 %v418, 8
      %v471 = vpop.permute.xlu0 %470
      %472 = vrot.lane.b32.xlu0 %v425, 8
      %v473 = vpop.permute.xlu0 %472
      %474 = vrot.lane.b32.xlu0 %v432, 8
      %v475 = vpop.permute.xlu0 %474
      %476 = vrot.lane.b32.xlu0 %v439, 8
      %v477 = vpop.permute.xlu0 %476
      %478 = vrot.lane.b32.xlu0 %v446, 8
      %v479 = vpop.permute.xlu0 %478
      %480 = vrot.lane.b32.xlu0 %v453, 8
      %v481 = vpop.permute.xlu0 %480
      %482 = vrot.lane.b32.xlu0 %v460, 8
      %v483 = vpop.permute.xlu0 %482
      %484 = vrot.lane.b32.xlu0 %v467, 8
      %v485 = vpop.permute.xlu0 %484
      %v495 = vrot.slane 0, 1
      %v496 = vrot.slane %v397, 1
      %v497 = vrot.slane %v398, 1
      %v498 = vrot.slane %v399, 1
      %v499 = vrot.slane %v400, 1
      %v500 = vrot.slane %v401, 1
      %v501 = vrot.slane %v402, 1
      %v502 = vrot.slane %v403, 1
      %v503 = vrot.slane %v404, 1
      %504 = vrot.lane.b32.xlu0 %v495, 16
      %v505 = vpop.permute.xlu0 %504
      %506 = vrot.lane.b32.xlu0 %v496, 16
      %v507 = vpop.permute.xlu0 %506
      %508 = vrot.lane.b32.xlu0 %v497, 16
      %v509 = vpop.permute.xlu0 %508
      %510 = vrot.lane.b32.xlu0 %v498, 16
      %v511 = vpop.permute.xlu0 %510
      %512 = vrot.lane.b32.xlu0 %v499, 16
      %v513 = vpop.permute.xlu0 %512
      %514 = vrot.lane.b32.xlu0 %v500, 16
      %v515 = vpop.permute.xlu0 %514
      %516 = vrot.lane.b32.xlu0 %v501, 16
      %v517 = vpop.permute.xlu0 %516
      %518 = vrot.lane.b32.xlu0 %v502, 16
      %v519 = vpop.permute.xlu0 %518
      %520 = vrot.lane.b32.xlu0 %v503, 16
      %v521 = vpop.permute.xlu0 %520
      %v522 = vrot.slane %v406, 1
      %v523 = vrot.slane %v408, 2
      %v524 = vor.u32 %v522, %v523
      %v525 = vrot.slane %v413, 1
      %v526 = vrot.slane %v415, 2
      %v527 = vor.u32 %v525, %v526
      %v528 = vrot.slane %v420, 1
      %v529 = vrot.slane %v422, 2
      %v530 = vor.u32 %v528, %v529
      %v531 = vrot.slane %v427, 1
      %v532 = vrot.slane %v429, 2
      %v533 = vor.u32 %v531, %v532
      %v534 = vrot.slane %v434, 1
      %v535 = vrot.slane %v436, 2
      %v536 = vor.u32 %v534, %v535
      %v537 = vrot.slane %v441, 1
      %v538 = vrot.slane %v443, 2
      %v539 = vor.u32 %v537, %v538
      %v540 = vrot.slane %v448, 1
      %v541 = vrot.slane %v450, 2
      %v542 = vor.u32 %v540, %v541
      %v543 = vrot.slane %v455, 1
      %v544 = vrot.slane %v457, 2
      %v545 = vor.u32 %v543, %v544
      %v546 = vrot.slane %v462, 1
      %v547 = vrot.slane %v464, 2
      %v548 = vor.u32 %v546, %v547
      %549 = vrot.lane.b32.xlu0 %v524, 24
      %v550 = vpop.permute.xlu0 %549
      %551 = vrot.lane.b32.xlu0 %v527, 24
      %v552 = vpop.permute.xlu0 %551
      %553 = vrot.lane.b32.xlu0 %v530, 24
      %v554 = vpop.permute.xlu0 %553
      %555 = vrot.lane.b32.xlu0 %v533, 24
      %v556 = vpop.permute.xlu0 %555
      %557 = vrot.lane.b32.xlu0 %v536, 24
      %v558 = vpop.permute.xlu0 %557
      %559 = vrot.lane.b32.xlu0 %v539, 24
      %v560 = vpop.permute.xlu0 %559
      %561 = vrot.lane.b32.xlu0 %v542, 24
      %v562 = vpop.permute.xlu0 %561
      %563 = vrot.lane.b32.xlu0 %v545, 24
      %v564 = vpop.permute.xlu0 %563
      %565 = vrot.lane.b32.xlu0 %v548, 24
      %v566 = vpop.permute.xlu0 %565
      %v567 = vrot.slane 0, 2
      %v568 = vrot.slane %v397, 2
      %v569 = vrot.slane %v398, 2
      %v570 = vrot.slane %v399, 2
      %v571 = vrot.slane %v400, 2
      %v572 = vrot.slane %v401, 2
      %v573 = vrot.slane %v402, 2
      %v574 = vrot.slane %v403, 2
      %v575 = vrot.slane %v404, 2
      %576 = vrot.lane.b32.xlu0 %v567, 32
      %v577 = vpop.permute.xlu0 %576
      %578 = vrot.lane.b32.xlu0 %v568, 32
      %v579 = vpop.permute.xlu0 %578
      %580 = vrot.lane.b32.xlu0 %v569, 32
      %v581 = vpop.permute.xlu0 %580
      %582 = vrot.lane.b32.xlu0 %v570, 32
      %v583 = vpop.permute.xlu0 %582
      %584 = vrot.lane.b32.xlu0 %v571, 32
      %v585 = vpop.permute.xlu0 %584
      %586 = vrot.lane.b32.xlu0 %v572, 32
      %v587 = vpop.permute.xlu0 %586
      %588 = vrot.lane.b32.xlu0 %v573, 32
      %v589 = vpop.permute.xlu0 %588
      %590 = vrot.lane.b32.xlu0 %v574, 32
      %v591 = vpop.permute.xlu0 %590
      %592 = vrot.lane.b32.xlu0 %v575, 32
      %v593 = vpop.permute.xlu0 %592
      %v594 = vrot.slane %v406, 2
      %v595 = vrot.slane %v408, 3
      %v596 = vor.u32 %v594, %v595
      %v597 = vrot.slane %v413, 2
      %v598 = vrot.slane %v415, 3
      %v599 = vor.u32 %v597, %v598
      %v600 = vrot.slane %v420, 2
      %v601 = vrot.slane %v422, 3
      %v602 = vor.u32 %v600, %v601
      %v603 = vrot.slane %v427, 2
      %v604 = vrot.slane %v429, 3
      %v605 = vor.u32 %v603, %v604
      %v606 = vrot.slane %v434, 2
      %v607 = vrot.slane %v436, 3
      %v608 = vor.u32 %v606, %v607
      %v609 = vrot.slane %v441, 2
      %v610 = vrot.slane %v443, 3
      %v611 = vor.u32 %v609, %v610
      %v612 = vrot.slane %v448, 2
      %v613 = vrot.slane %v450, 3
      %v614 = vor.u32 %v612, %v613
      %v615 = vrot.slane %v455, 2
      %v616 = vrot.slane %v457, 3
      %v617 = vor.u32 %v615, %v616
      %v618 = vrot.slane %v462, 2
      %v619 = vrot.slane %v464, 3
      %v620 = vor.u32 %v618, %v619
      %621 = vrot.lane.b32.xlu0 %v596, 40
      %v622 = vpop.permute.xlu0 %621
      %623 = vrot.lane.b32.xlu0 %v599, 40
      %v624 = vpop.permute.xlu0 %623
      %625 = vrot.lane.b32.xlu0 %v602, 40
      %v626 = vpop.permute.xlu0 %625
      %627 = vrot.lane.b32.xlu0 %v605, 40
      %v628 = vpop.permute.xlu0 %627
      %629 = vrot.lane.b32.xlu0 %v608, 40
      %v630 = vpop.permute.xlu0 %629
      %631 = vrot.lane.b32.xlu0 %v611, 40
      %v632 = vpop.permute.xlu0 %631
      %633 = vrot.lane.b32.xlu0 %v614, 40
      %v634 = vpop.permute.xlu0 %633
      %635 = vrot.lane.b32.xlu0 %v617, 40
      %v636 = vpop.permute.xlu0 %635
      %637 = vrot.lane.b32.xlu0 %v620, 40
      %v638 = vpop.permute.xlu0 %637
      %v639 = vrot.slane 0, 3
      %v640 = vrot.slane %v397, 3
      %v641 = vrot.slane %v398, 3
      %v642 = vrot.slane %v399, 3
      %v643 = vrot.slane %v400, 3
      %v644 = vrot.slane %v401, 3
      %v645 = vrot.slane %v402, 3
      %v646 = vrot.slane %v403, 3
      %v647 = vrot.slane %v404, 3
      %648 = vrot.lane.b32.xlu0 %v639, 48
      %v649 = vpop.permute.xlu0 %648
      %650 = vrot.lane.b32.xlu0 %v640, 48
      %v651 = vpop.permute.xlu0 %650
      %652 = vrot.lane.b32.xlu0 %v641, 48
      %v653 = vpop.permute.xlu0 %652
      %654 = vrot.lane.b32.xlu0 %v642, 48
      %v655 = vpop.permute.xlu0 %654
      %656 = vrot.lane.b32.xlu0 %v643, 48
      %v657 = vpop.permute.xlu0 %656
      %658 = vrot.lane.b32.xlu0 %v644, 48
      %v659 = vpop.permute.xlu0 %658
      %660 = vrot.lane.b32.xlu0 %v645, 48
      %v661 = vpop.permute.xlu0 %660
      %662 = vrot.lane.b32.xlu0 %v646, 48
      %v663 = vpop.permute.xlu0 %662
      %664 = vrot.lane.b32.xlu0 %v647, 48
      %v665 = vpop.permute.xlu0 %664
      %vm666 = vcmask 64512
      %v668 = vsel %vm666, 0, %v469
      %v670 = vsel %vm666, %v397, %v471
      %v672 = vsel %vm666, %v398, %v473
      %v674 = vsel %vm666, %v399, %v475
      %v676 = vsel %vm666, %v400, %v477
      %v678 = vsel %vm666, %v401, %v479
      %v680 = vsel %vm666, %v402, %v481
      %v682 = vsel %vm666, %v403, %v483
      %v684 = vsel %vm666, %v404, %v485
      %vm685 = vcmask 130048
      %v687 = vsel %vm685, %v668, %v505
      %v689 = vsel %vm685, %v670, %v507
      %v691 = vsel %vm685, %v672, %v509
      %v693 = vsel %vm685, %v674, %v511
      %v695 = vsel %vm685, %v676, %v513
      %v697 = vsel %vm685, %v678, %v515
      %v699 = vsel %vm685, %v680, %v517
      %v701 = vsel %vm685, %v682, %v519
      %v703 = vsel %vm685, %v684, %v521
      %vm704 = vcmask 195584
      %v706 = vsel %vm704, %v687, %v550
      %v708 = vsel %vm704, %v689, %v552
      %v710 = vsel %vm704, %v691, %v554
      %v712 = vsel %vm704, %v693, %v556
      %v714 = vsel %vm704, %v695, %v558
      %v716 = vsel %vm704, %v697, %v560
      %v718 = vsel %vm704, %v699, %v562
      %v720 = vsel %vm704, %v701, %v564
      %v722 = vsel %vm704, %v703, %v566
      %vm723 = vcmask 261120
      %v725 = vsel %vm723, %v706, %v577
      %v727 = vsel %vm723, %v708, %v579
      %v729 = vsel %vm723, %v710, %v581
      %v731 = vsel %vm723, %v712, %v583
      %v733 = vsel %vm723, %v714, %v585
      %v735 = vsel %vm723, %v716, %v587
      %v737 = vsel %vm723, %v718, %v589
      %v739 = vsel %vm723, %v720, %v591
      %v741 = vsel %vm723, %v722, %v593
      %vm742 = vcmask 326656
      %v744 = vsel %vm742, %v725, %v622
      %v746 = vsel %vm742, %v727, %v624
      %v748 = vsel %vm742, %v729, %v626
      %v750 = vsel %vm742, %v731, %v628
      %v752 = vsel %vm742, %v733, %v630
      %v754 = vsel %vm742, %v735, %v632
      %v756 = vsel %vm742, %v737, %v634
      %v758 = vsel %vm742, %v739, %v636
      %v760 = vsel %vm742, %v741, %v638
      %vm761 = vcmask 392192
      %v763 = vsel %vm761, %v744, %v649
      %v765 = vsel %vm761, %v746, %v651
      %v767 = vsel %vm761, %v748, %v653
      %v769 = vsel %vm761, %v750, %v655
      %v771 = vsel %vm761, %v752, %v657
      %v773 = vsel %vm761, %v754, %v659
      %v775 = vsel %vm761, %v756, %v661
      %v777 = vsel %vm761, %v758, %v663
      %v779 = vsel %vm761, %v760, %v665
      %v780 = vld [vmem:[%s210] sm:$0xf]
      %v781 = vld [vmem:[%s210 + $0x4] sm:$0xf]
      %v782 = vld [vmem:[%s210 + $0x8] sm:$0xf]
      %v783 = vld [vmem:[%s210 + $0xc] sm:$0xf]
      %v784 = vld [vmem:[%s210 + $0x10] sm:$0xf]
      %v785 = vld [vmem:[%s210 + $0x14] sm:$0xf]
      %v786 = vld [vmem:[%s210 + $0x18] sm:$0xf]
      %s787 = scalar_lea.vmem %s210, 28
      %v788 = vld [vmem:[%s787] sm:$0xf]
      %v789 = vld [vmem:[%s787 + $0x4] sm:$0xf]
      %v790 = vld [vmem:[%s787 + $0x8] sm:$0xf]
      %v791 = vld [vmem:[%s787 + $0xc] sm:$0xf]
      %v792 = vld [vmem:[%s787 + $0x10] sm:$0xf]
      %v793 = vld [vmem:[%s787 + $0x14] sm:$0xf]
      %v794 = vld [vmem:[%s787 + $0x18] sm:$0xf]
      %v802 = vunpack.c.l.b16 %v763
      %v803 = vunpack.c.l.b16 %v765
      %v804 = vunpack.c.l.b16 %v767
      %v805 = vunpack.c.l.b16 %v769
      %v806 = vunpack.c.l.b16 %v771
      %v807 = vunpack.c.l.b16 %v773
      %v808 = vunpack.c.l.b16 %v775
      %v809 = vpack.c.b16 %v802, %v802
      %v810 = vpack.c.b16 %v804, %v803
      %v811 = vpack.c.b16 %v806, %v805
      %v812 = vpack.c.b16 %v808, %v807
      %v820 = vunpack.c.l.b16 %v788
      %v821 = vunpack.c.l.b16 %v789
      %v822 = vunpack.c.l.b16 %v790
      %v823 = vunpack.c.l.b16 %v791
      %v824 = vunpack.c.l.b16 %v792
      %v825 = vunpack.c.l.b16 %v793
      %v826 = vunpack.c.l.b16 %v794
      %v827 = vpack.c.b16 %v821, %v820
      %v828 = vpack.c.b16 %v823, %v822
      %v829 = vpack.c.b16 %v825, %v824
      %v830 = vpack.c.b16 %v826, %v826
      %vm834 = vcmask 457728
      %v836 = vsel %vm834, %v809, 0
      %v839 = vsel %vm834, %v810, 0
      %v842 = vsel %vm834, %v811, 0
      %v845 = vsel %vm834, %v812, 0
      %vm847 = vcmask 1043456
      %v849 = vsel %vm847, %v830, 0
      %851 = vmatprep.subr.bf16.mxu0 0
      %852 = vmatpush1.bf16.msra.mxu0 %v827
      %853 = vmatprep.subr.bf16.mxu0 0
      %854 = vmatpush1.bf16.msra.mxu0 %v828
      %855 = vmatprep.subr.bf16.mxu0 0
      %856 = vmatpush1.bf16.msra.mxu0 %v829
      %857 = vmatprep.subr.bf16.mxu0 0
      %858 = vmatpush1.bf16.msra.mxu0 %v849
      %859 = vmatprep.subr.bf16.mxu0 0
      %860 = vmatpush1.bf16.msra.mxu0 0
      %861 = vmatprep.subr.bf16.mxu0 0
      %862 = vmatpush1.bf16.msra.mxu0 0
      %863 = vmatprep.subr.bf16.mxu0 0
      %864 = vmatpush1.bf16.msra.mxu0 0
      %865 = vmatprep.subr.bf16.mxu0 0
      %866 = vmatpush1.bf16.msra.mxu0 0
      %867 = vmatprep.subr.bf16.mxu0 0
      %868 = vmatpush1.bf16.msra.mxu0 0
      %869 = vmatprep.subr.bf16.mxu0 0
      %870 = vmatpush1.bf16.msra.mxu0 0
      %871 = vmatprep.subr.bf16.mxu0 0
      %872 = vmatpush1.bf16.msra.mxu0 0
      %873 = vmatprep.subr.bf16.mxu0 0
      %874 = vmatpush1.bf16.msra.mxu0 0
      %875 = vmatprep.subr.bf16.mxu0 0
      %876 = vmatpush1.bf16.msra.mxu0 0
      %877 = vmatprep.subr.bf16.mxu0 0
      %878 = vmatpush1.bf16.msra.mxu0 0
      %879 = vmatprep.subr.bf16.mxu0 0
      %880 = vmatpush1.bf16.msra.mxu0 0
      %881 = vmatprep.subr.bf16.mxu0 0
      %882 = vmatpush1.bf16.msra.mxu0 0
      %883 = vmatprep.mubr.bf16.mxu0 0
      %884 = vmatmul.mubr.bf16.gmra.mrb[0].mxu0 %v836
      %v885 = vpop.f32.mrb[0].mxu0
      %v886 = vadd.f32 0.0, %v885
      %v887 = vpop.f32.mrb[0].mxu0
      %v888 = vpop.f32.mrb[0].mxu0
      %v889 = vadd.f32 0.0, %v888
      %v890 = vpop.f32.mrb[0].mxu0
      %891 = vmatprep.mubr.bf16.mxu0 0
      %892 = vmatmul.mubr.bf16.gmra.mrb[0].mxu0 %v839
      %v893 = vpop.f32.mrb[0].mxu0
      %v894 = vadd.f32 0.0, %v893
      %v895 = vpop.f32.mrb[0].mxu0
      %v896 = vpop.f32.mrb[0].mxu0
      %v897 = vadd.f32 0.0, %v896
      %v898 = vpop.f32.mrb[0].mxu0
      %899 = vmatprep.mubr.bf16.mxu0 0
      %900 = vmatmul.mubr.bf16.gmra.mrb[0].mxu0 %v842
      %v901 = vpop.f32.mrb[0].mxu0
      %v902 = vadd.f32 0.0, %v901
      %v903 = vpop.f32.mrb[0].mxu0
      %v904 = vpop.f32.mrb[0].mxu0
      %v905 = vadd.f32 0.0, %v904
      %v906 = vpop.f32.mrb[0].mxu0
      %907 = vmatprep.mubr.bf16.mxu0 0
      %908 = vmatmul.mubr.bf16.gmra.mrb[0].mxu0 %v845
      %v909 = vpop.f32.mrb[0].mxu0
      %v910 = vadd.f32 0.0, %v909
      %v911 = vpop.f32.mrb[0].mxu0
      %v912 = vpop.f32.mrb[0].mxu0
      %v913 = vadd.f32 0.0, %v912
      %v914 = vpop.f32.mrb[0].mxu0
      %915 = vdwg.mxu0
      %v916 = vpack.c.b16 %v803, %v802
      %v917 = vpack.c.b16 %v805, %v804
      %v918 = vpack.c.b16 %v807, %v806
      %v926 = vunpack.c.l.b16 %v780
      %v927 = vunpack.c.l.b16 %v781
      %v928 = vunpack.c.l.b16 %v782
      %v929 = vunpack.c.l.b16 %v783
      %v930 = vunpack.c.l.b16 %v784
      %v931 = vunpack.c.l.b16 %v785
      %v932 = vunpack.c.l.b16 %v786
      %v933 = vpack.c.b16 %v927, %v926
      %v934 = vpack.c.b16 %v929, %v928
      %v935 = vpack.c.b16 %v931, %v930
      %v936 = vpack.c.b16 %v932, %v932
      %v941 = vsel %vm834, %v916, 0
      %v944 = vsel %vm834, %v917, 0
      %v947 = vsel %vm834, %v918, 0
      %v950 = vsel %vm847, %v936, 0
      %952 = vmatprep.subr.bf16.mxu0 0
      %953 = vmatpush1.bf16.msra.mxu0 %v933
      %954 = vmatprep.subr.bf16.mxu0 0
      %955 = vmatpush1.bf16.msra.mxu0 %v934
      %956 = vmatprep.subr.bf16.mxu0 0
      %957 = vmatpush1.bf16.msra.mxu0 %v935
      %958 = vmatprep.subr.bf16.mxu0 0
      %959 = vmatpush1.bf16.msra.mxu0 %v950
      %960 = vmatprep.subr.bf16.mxu0 0
      %961 = vmatpush1.bf16.msra.mxu0 0
      %962 = vmatprep.subr.bf16.mxu0 0
      %963 = vmatpush1.bf16.msra.mxu0 0
      %964 = vmatprep.subr.bf16.mxu0 0
      %965 = vmatpush1.bf16.msra.mxu0 0
      %966 = vmatprep.subr.bf16.mxu0 0
      %967 = vmatpush1.bf16.msra.mxu0 0
      %968 = vmatprep.subr.bf16.mxu0 0
      %969 = vmatpush1.bf16.msra.mxu0 0
      %970 = vmatprep.subr.bf16.mxu0 0
      %971 = vmatpush1.bf16.msra.mxu0 0
      %972 = vmatprep.subr.bf16.mxu0 0
      %973 = vmatpush1.bf16.msra.mxu0 0
      %974 = vmatprep.subr.bf16.mxu0 0
      %975 = vmatpush1.bf16.msra.mxu0 0
      %976 = vmatprep.subr.bf16.mxu0 0
      %977 = vmatpush1.bf16.msra.mxu0 0
      %978 = vmatprep.subr.bf16.mxu0 0
      %979 = vmatpush1.bf16.msra.mxu0 0
      %980 = vmatprep.subr.bf16.mxu0 0
      %981 = vmatpush1.bf16.msra.mxu0 0
      %982 = vmatprep.subr.bf16.mxu0 0
      %983 = vmatpush1.bf16.msra.mxu0 0
      %984 = vmatprep.mubr.bf16.mxu0 0
      %985 = vmatmul.mubr.bf16.gmra.mrb[0].mxu0 %v836
      %v986 = vpop.f32.mrb[0].mxu0
      %v987 = vadd.f32 %v886, %v986
      %v988 = vpop.f32.mrb[0].mxu0
      %v989 = vpop.f32.mrb[0].mxu0
      %v990 = vadd.f32 %v889, %v989
      %v991 = vpop.f32.mrb[0].mxu0
      %992 = vmatprep.mubr.bf16.mxu0 0
      %993 = vmatmul.mubr.bf16.gmra.mrb[0].mxu0 %v941
      %v994 = vpop.f32.mrb[0].mxu0
      %v995 = vadd.f32 %v894, %v994
      %v996 = vpop.f32.mrb[0].mxu0
      %v997 = vpop.f32.mrb[0].mxu0
      %v998 = vadd.f32 %v897, %v997
      %v999 = vpop.f32.mrb[0].mxu0
      %1000 = vmatprep.mubr.bf16.mxu0 0
      %1001 = vmatmul.mubr.bf16.gmra.mrb[0].mxu0 %v944
      %v1002 = vpop.f32.mrb[0].mxu0
      %v1003 = vadd.f32 %v902, %v1002
      %v1004 = vpop.f32.mrb[0].mxu0
      %v1005 = vpop.f32.mrb[0].mxu0
      %v1006 = vadd.f32 %v905, %v1005
      %v1007 = vpop.f32.mrb[0].mxu0
      %1008 = vmatprep.mubr.bf16.mxu0 0
      %1009 = vmatmul.mubr.bf16.gmra.mrb[0].mxu0 %v947
      %v1010 = vpop.f32.mrb[0].mxu0
      %v1011 = vadd.f32 %v910, %v1010
      %v1012 = vpop.f32.mrb[0].mxu0
      %v1013 = vpop.f32.mrb[0].mxu0
      %v1014 = vadd.f32 %v913, %v1013
      %v1015 = vpop.f32.mrb[0].mxu0
      %1016 = vdwg.mxu0
      %s1017 = scalar_lea.vmem %s210, 56
      %v1018 = vld [vmem:[%s1017] sm:$0xf]
      %v1019 = vld [vmem:[%s1017 + $0x4] sm:$0xf]
      %v1020 = vld [vmem:[%s1017 + $0x8] sm:$0xf]
      %v1021 = vld [vmem:[%s1017 + $0xc] sm:$0xf]
      %v1022 = vld [vmem:[%s1017 + $0x10] sm:$0xf]
      %v1023 = vld [vmem:[%s1017 + $0x14] sm:$0xf]
      %v1024 = vld [vmem:[%s1017 + $0x18] sm:$0xf]
      %v1026 = vunpack.c.l.b16 %v777
      %v1027 = vpack.c.b16 %v1026, %v808
      %v1035 = vunpack.c.l.b16 %v1018
      %v1036 = vunpack.c.l.b16 %v1019
      %v1037 = vunpack.c.l.b16 %v1020
      %v1038 = vunpack.c.l.b16 %v1021
      %v1039 = vunpack.c.l.b16 %v1022
      %v1040 = vunpack.c.l.b16 %v1023
      %v1041 = vunpack.c.l.b16 %v1024
      %v1042 = vpack.c.b16 %v1036, %v1035
      %v1043 = vpack.c.b16 %v1038, %v1037
      %v1044 = vpack.c.b16 %v1040, %v1039
      %v1045 = vpack.c.b16 %v1041, %v1041
      %v1050 = vsel %vm834, %v1027, 0
      %v1053 = vsel %vm847, %v1045, 0
      %1055 = vmatprep.subr.bf16.mxu0 0
      %1056 = vmatpush1.bf16.msra.mxu0 %v1042
      %1057 = vmatprep.subr.bf16.mxu0 0
      %1058 = vmatpush1.bf16.msra.mxu0 %v1043
      %1059 = vmatprep.subr.bf16.mxu0 0
      %1060 = vmatpush1.bf16.msra.mxu0 %v1044
      %1061 = vmatprep.subr.bf16.mxu0 0
      %1062 = vmatpush1.bf16.msra.mxu0 %v1053
      %1063 = vmatprep.subr.bf16.mxu0 0
      %1064 = vmatpush1.bf16.msra.mxu0 0
      %1065 = vmatprep.subr.bf16.mxu0 0
      %1066 = vmatpush1.bf16.msra.mxu0 0
      %1067 = vmatprep.subr.bf16.mxu0 0
      %1068 = vmatpush1.bf16.msra.mxu0 0
      %1069 = vmatprep.subr.bf16.mxu0 0
      %1070 = vmatpush1.bf16.msra.mxu0 0
      %1071 = vmatprep.subr.bf16.mxu0 0
      %1072 = vmatpush1.bf16.msra.mxu0 0
      %1073 = vmatprep.subr.bf16.mxu0 0
      %1074 = vmatpush1.bf16.msra.mxu0 0
      %1075 = vmatprep.subr.bf16.mxu0 0
      %1076 = vmatpush1.bf16.msra.mxu0 0
      %1077 = vmatprep.subr.bf16.mxu0 0
      %1078 = vmatpush1.bf16.msra.mxu0 0
      %1079 = vmatprep.subr.bf16.mxu0 0
      %1080 = vmatpush1.bf16.msra.mxu0 0
      %1081 = vmatprep.subr.bf16.mxu0 0
      %1082 = vmatpush1.bf16.msra.mxu0 0
      %1083 = vmatprep.subr.bf16.mxu0 0
      %1084 = vmatpush1.bf16.msra.mxu0 0
      %1085 = vmatprep.subr.bf16.mxu0 0
      %1086 = vmatpush1.bf16.msra.mxu0 0
      %1087 = vmatprep.mubr.bf16.mxu0 0
      %1088 = vmatmul.mubr.bf16.gmra.mrb[0].mxu0 %v941
      %v1089 = vpop.f32.mrb[0].mxu0
      %v1090 = vadd.f32 0.0, %v1089
      %v1091 = vpop.f32.mrb[0].mxu0
      %v1092 = vpop.f32.mrb[0].mxu0
      %v1093 = vadd.f32 0.0, %v1092
      %v1094 = vpop.f32.mrb[0].mxu0
      %1095 = vmatprep.mubr.bf16.mxu0 0
      %1096 = vmatmul.mubr.bf16.gmra.mrb[0].mxu0 %v944
      %v1097 = vpop.f32.mrb[0].mxu0
      %v1098 = vadd.f32 0.0, %v1097
      %v1099 = vpop.f32.mrb[0].mxu0
      %v1100 = vpop.f32.mrb[0].mxu0
      %v1101 = vadd.f32 0.0, %v1100
      %v1102 = vpop.f32.mrb[0].mxu0
      %1103 = vmatprep.mubr.bf16.mxu0 0
      %1104 = vmatmul.mubr.bf16.gmra.mrb[0].mxu0 %v947
      %v1105 = vpop.f32.mrb[0].mxu0
      %v1106 = vadd.f32 0.0, %v1105
      %v1107 = vpop.f32.mrb[0].mxu0
      %v1108 = vpop.f32.mrb[0].mxu0
      %v1109 = vadd.f32 0.0, %v1108
      %v1110 = vpop.f32.mrb[0].mxu0
      %1111 = vmatprep.mubr.bf16.mxu0 0
      %1112 = vmatmul.mubr.bf16.gmra.mrb[0].mxu0 %v1050
      %v1113 = vpop.f32.mrb[0].mxu0
      %v1114 = vadd.f32 0.0, %v1113
      %v1115 = vpop.f32.mrb[0].mxu0
      %v1116 = vpop.f32.mrb[0].mxu0
      %v1117 = vadd.f32 0.0, %v1116
      %v1118 = vpop.f32.mrb[0].mxu0
      %1119 = vdwg.mxu0
      %v1120 = vadd.f32 %v987, %v1090
      %v1121 = vadd.f32 %v990, %v1093
      %v1122 = vadd.f32 %v995, %v1098
      %v1123 = vadd.f32 %v998, %v1101
      %v1124 = vadd.f32 %v1003, %v1106
      %v1125 = vadd.f32 %v1006, %v1109
      %v1126 = vadd.f32 %v1011, %v1114
      %v1127 = vadd.f32 %v1014, %v1117
      %s1128 = scalar_lea.vmem %s210, 84
      %v1129 = vld [vmem:[%s1128] sm:$0xf]
      %v1130 = vld [vmem:[%s1128 + $0x4] sm:$0xf]
      %v1131 = vld [vmem:[%s1128 + $0x8] sm:$0xf]
      %v1132 = vld [vmem:[%s1128 + $0xc] sm:$0xf]
      %v1133 = vld [vmem:[%s1128 + $0x10] sm:$0xf]
      %v1134 = vld [vmem:[%s1128 + $0x14] sm:$0xf]
      %v1135 = vld [vmem:[%s1128 + $0x18] sm:$0xf]
      %v1137 = vunpack.c.l.b16 %v779
      %v1138 = vpack.c.b16 %v1137, %v1026
      %v1146 = vunpack.c.l.b16 %v1129
      %v1147 = vunpack.c.l.b16 %v1130
      %v1148 = vunpack.c.l.b16 %v1131
      %v1149 = vunpack.c.l.b16 %v1132
      %v1150 = vunpack.c.l.b16 %v1133
      %v1151 = vunpack.c.l.b16 %v1134
      %v1152 = vunpack.c.l.b16 %v1135
      %v1153 = vpack.c.b16 %v1147, %v1146
      %v1154 = vpack.c.b16 %v1149, %v1148
      %v1155 = vpack.c.b16 %v1151, %v1150
      %v1156 = vpack.c.b16 %v1152, %v1152
      %v1161 = vsel %vm834, %v1138, 0
      %v1164 = vsel %vm847, %v1156, 0
      %1166 = vmatprep.subr.bf16.mxu0 0
      %1167 = vmatpush1.bf16.msra.mxu0 %v1153
      %1168 = vmatprep.subr.bf16.mxu0 0
      %1169 = vmatpush1.bf16.msra.mxu0 %v1154
      %1170 = vmatprep.subr.bf16.mxu0 0
      %1171 = vmatpush1.bf16.msra.mxu0 %v1155
      %1172 = vmatprep.subr.bf16.mxu0 0
      %1173 = vmatpush1.bf16.msra.mxu0 %v1164
      %1174 = vmatprep.subr.bf16.mxu0 0
      %1175 = vmatpush1.bf16.msra.mxu0 0
      %1176 = vmatprep.subr.bf16.mxu0 0
      %1177 = vmatpush1.bf16.msra.mxu0 0
      %1178 = vmatprep.subr.bf16.mxu0 0
      %1179 = vmatpush1.bf16.msra.mxu0 0
      %1180 = vmatprep.subr.bf16.mxu0 0
      %1181 = vmatpush1.bf16.msra.mxu0 0
      %1182 = vmatprep.subr.bf16.mxu0 0
      %1183 = vmatpush1.bf16.msra.mxu0 0
      %1184 = vmatprep.subr.bf16.mxu0 0
      %1185 = vmatpush1.bf16.msra.mxu0 0
      %1186 = vmatprep.subr.bf16.mxu0 0
      %1187 = vmatpush1.bf16.msra.mxu0 0
      %1188 = vmatprep.subr.bf16.mxu0 0
      %1189 = vmatpush1.bf16.msra.mxu0 0
      %1190 = vmatprep.subr.bf16.mxu0 0
      %1191 = vmatpush1.bf16.msra.mxu0 0
      %1192 = vmatprep.subr.bf16.mxu0 0
      %1193 = vmatpush1.bf16.msra.mxu0 0
      %1194 = vmatprep.subr.bf16.mxu0 0
      %1195 = vmatpush1.bf16.msra.mxu0 0
      %1196 = vmatprep.subr.bf16.mxu0 0
      %1197 = vmatpush1.bf16.msra.mxu0 0
      %1198 = vmatprep.mubr.bf16.mxu0 0
      %1199 = vmatmul.mubr.bf16.gmra.mrb[0].mxu0 %v839
      %v1200 = vpop.f32.mrb[0].mxu0
      %v1201 = vadd.f32 0.0, %v1200
      %v1202 = vpop.f32.mrb[0].mxu0
      %v1203 = vpop.f32.mrb[0].mxu0
      %v1204 = vadd.f32 0.0, %v1203
      %v1205 = vpop.f32.mrb[0].mxu0
      %1206 = vmatprep.mubr.bf16.mxu0 0
      %1207 = vmatmul.mubr.bf16.gmra.mrb[0].mxu0 %v842
      %v1208 = vpop.f32.mrb[0].mxu0
      %v1209 = vadd.f32 0.0, %v1208
      %v1210 = vpop.f32.mrb[0].mxu0
      %v1211 = vpop.f32.mrb[0].mxu0
      %v1212 = vadd.f32 0.0, %v1211
      %v1213 = vpop.f32.mrb[0].mxu0
      %1214 = vmatprep.mubr.bf16.mxu0 0
      %1215 = vmatmul.mubr.bf16.gmra.mrb[0].mxu0 %v845
      %v1216 = vpop.f32.mrb[0].mxu0
      %v1217 = vadd.f32 0.0, %v1216
      %v1218 = vpop.f32.mrb[0].mxu0
      %v1219 = vpop.f32.mrb[0].mxu0
      %v1220 = vadd.f32 0.0, %v1219
      %v1221 = vpop.f32.mrb[0].mxu0
      %1222 = vmatprep.mubr.bf16.mxu0 0
      %1223 = vmatmul.mubr.bf16.gmra.mrb[0].mxu0 %v1161
      %v1224 = vpop.f32.mrb[0].mxu0
      %v1225 = vadd.f32 0.0, %v1224
      %v1226 = vpop.f32.mrb[0].mxu0
      %v1227 = vpop.f32.mrb[0].mxu0
      %v1228 = vadd.f32 0.0, %v1227
      %v1229 = vpop.f32.mrb[0].mxu0
      %1230 = vdwg.mxu0
      %v1231 = vadd.f32 %v1120, %v1201
      %v1232 = vadd.f32 %v1121, %v1204
      %v1233 = vadd.f32 %v1122, %v1209
      %v1234 = vadd.f32 %v1123, %v1212
      %v1235 = vadd.f32 %v1124, %v1217
      %v1236 = vadd.f32 %v1125, %v1220
      %v1237 = vadd.f32 %v1126, %v1225
      %v1238 = vadd.f32 %v1127, %v1228
      %s1239 = scalar_lea.vmem %s210, 112
      %v1240 = vld [vmem:[%s1239] sm:$0xf]
      %v1241 = vld [vmem:[%s1239 + $0x4] sm:$0xf]
      %v1242 = vld [vmem:[%s1239 + $0x8] sm:$0xf]
      %v1243 = vld [vmem:[%s1239 + $0xc] sm:$0xf]
      %v1244 = vld [vmem:[%s1239 + $0x10] sm:$0xf]
      %v1245 = vld [vmem:[%s1239 + $0x14] sm:$0xf]
      %v1246 = vld [vmem:[%s1239 + $0x18] sm:$0xf]
      %v1247 = vpack.c.b16 %v802, %v1137
      %v1255 = vunpack.c.l.b16 %v1240
      %v1256 = vunpack.c.l.b16 %v1241
      %v1257 = vunpack.c.l.b16 %v1242
      %v1258 = vunpack.c.l.b16 %v1243
      %v1259 = vunpack.c.l.b16 %v1244
      %v1260 = vunpack.c.l.b16 %v1245
      %v1261 = vunpack.c.l.b16 %v1246
      %v1262 = vpack.c.b16 %v1256, %v1255
      %v1263 = vpack.c.b16 %v1258, %v1257
      %v1264 = vpack.c.b16 %v1260, %v1259
      %v1265 = vpack.c.b16 %v1261, %v1261
      %v1270 = vsel %vm834, %v1247, 0
      %v1273 = vsel %vm847, %v1265, 0
      %1275 = vmatprep.subr.bf16.mxu0 0
      %1276 = vmatpush1.bf16.msra.mxu0 %v1262
      %1277 = vmatprep.subr.bf16.mxu0 0
      %1278 = vmatpush1.bf16.msra.mxu0 %v1263
      %1279 = vmatprep.subr.bf16.mxu0 0
      %1280 = vmatpush1.bf16.msra.mxu0 %v1264
      %1281 = vmatprep.subr.bf16.mxu0 0
      %1282 = vmatpush1.bf16.msra.mxu0 %v1273
      %1283 = vmatprep.subr.bf16.mxu0 0
      %1284 = vmatpush1.bf16.msra.mxu0 0
      %1285 = vmatprep.subr.bf16.mxu0 0
      %1286 = vmatpush1.bf16.msra.mxu0 0
      %1287 = vmatprep.subr.bf16.mxu0 0
      %1288 = vmatpush1.bf16.msra.mxu0 0
      %1289 = vmatprep.subr.bf16.mxu0 0
      %1290 = vmatpush1.bf16.msra.mxu0 0
      %1291 = vmatprep.subr.bf16.mxu0 0
      %1292 = vmatpush1.bf16.msra.mxu0 0
      %1293 = vmatprep.subr.bf16.mxu0 0
      %1294 = vmatpush1.bf16.msra.mxu0 0
      %1295 = vmatprep.subr.bf16.mxu0 0
      %1296 = vmatpush1.bf16.msra.mxu0 0
      %1297 = vmatprep.subr.bf16.mxu0 0
      %1298 = vmatpush1.bf16.msra.mxu0 0
      %1299 = vmatprep.subr.bf16.mxu0 0
      %1300 = vmatpush1.bf16.msra.mxu0 0
      %1301 = vmatprep.subr.bf16.mxu0 0
      %1302 = vmatpush1.bf16.msra.mxu0 0
      %1303 = vmatprep.subr.bf16.mxu0 0
      %1304 = vmatpush1.bf16.msra.mxu0 0
      %1305 = vmatprep.subr.bf16.mxu0 0
      %1306 = vmatpush1.bf16.msra.mxu0 0
      %1307 = vmatprep.mubr.bf16.mxu0 0
      %1308 = vmatmul.mubr.bf16.gmra.mrb[0].mxu0 %v944
      %v1309 = vpop.f32.mrb[0].mxu0
      %v1310 = vadd.f32 0.0, %v1309
      %v1311 = vpop.f32.mrb[0].mxu0
      %v1312 = vpop.f32.mrb[0].mxu0
      %v1313 = vadd.f32 0.0, %v1312
      %v1314 = vpop.f32.mrb[0].mxu0
      %1315 = vmatprep.mubr.bf16.mxu0 0
      %1316 = vmatmul.mubr.bf16.gmra.mrb[0].mxu0 %v947
      %v1317 = vpop.f32.mrb[0].mxu0
      %v1318 = vadd.f32 0.0, %v1317
      %v1319 = vpop.f32.mrb[0].mxu0
      %v1320 = vpop.f32.mrb[0].mxu0
      %v1321 = vadd.f32 0.0, %v1320
      %v1322 = vpop.f32.mrb[0].mxu0
      %1323 = vmatprep.mubr.bf16.mxu0 0
      %1324 = vmatmul.mubr.bf16.gmra.mrb[0].mxu0 %v1050
      %v1325 = vpop.f32.mrb[0].mxu0
      %v1326 = vadd.f32 0.0, %v1325
      %v1327 = vpop.f32.mrb[0].mxu0
      %v1328 = vpop.f32.mrb[0].mxu0
      %v1329 = vadd.f32 0.0, %v1328
      %v1330 = vpop.f32.mrb[0].mxu0
      %1331 = vmatprep.mubr.bf16.mxu0 0
      %1332 = vmatmul.mubr.bf16.gmra.mrb[0].mxu0 %v1270
      %v1333 = vpop.f32.mrb[0].mxu0
      %v1334 = vadd.f32 0.0, %v1333
      %v1335 = vpop.f32.mrb[0].mxu0
      %v1336 = vpop.f32.mrb[0].mxu0
      %v1337 = vadd.f32 0.0, %v1336
      %v1338 = vpop.f32.mrb[0].mxu0
      %1339 = vdwg.mxu0
      %v1340 = vadd.f32 %v1231, %v1310
      %v1341 = vadd.f32 %v1232, %v1313
      %v1342 = vadd.f32 %v1233, %v1318
      %v1343 = vadd.f32 %v1234, %v1321
      %v1344 = vadd.f32 %v1235, %v1326
      %v1345 = vadd.f32 %v1236, %v1329
      %v1346 = vadd.f32 %v1237, %v1334
      %v1347 = vadd.f32 %v1238, %v1337
      %s1348 = scalar_lea.vmem %s210, 140
      %v1349 = vld [vmem:[%s1348] sm:$0xf]
      %v1350 = vld [vmem:[%s1348 + $0x4] sm:$0xf]
      %v1351 = vld [vmem:[%s1348 + $0x8] sm:$0xf]
      %v1352 = vld [vmem:[%s1348 + $0xc] sm:$0xf]
      %v1353 = vld [vmem:[%s1348 + $0x10] sm:$0xf]
      %v1354 = vld [vmem:[%s1348 + $0x14] sm:$0xf]
      %v1355 = vld [vmem:[%s1348 + $0x18] sm:$0xf]
      %v1363 = vunpack.c.l.b16 %v1349
      %v1364 = vunpack.c.l.b16 %v1350
      %v1365 = vunpack.c.l.b16 %v1351
      %v1366 = vunpack.c.l.b16 %v1352
      %v1367 = vunpack.c.l.b16 %v1353
      %v1368 = vunpack.c.l.b16 %v1354
      %v1369 = vunpack.c.l.b16 %v1355
      %v1370 = vpack.c.b16 %v1364, %v1363
      %v1371 = vpack.c.b16 %v1366, %v1365
      %v1372 = vpack.c.b16 %v1368, %v1367
      %v1373 = vpack.c.b16 %v1369, %v1369
      %v1378 = vsel %vm847, %v1373, 0
      %1380 = vmatprep.subr.bf16.mxu0 0
      %1381 = vmatpush1.bf16.msra.mxu0 %v1370
      %1382 = vmatprep.subr.bf16.mxu0 0
      %1383 = vmatpush1.bf16.msra.mxu0 %v1371
      %1384 = vmatprep.subr.bf16.mxu0 0
      %1385 = vmatpush1.bf16.msra.mxu0 %v1372
      %1386 = vmatprep.subr.bf16.mxu0 0
      %1387 = vmatpush1.bf16.msra.mxu0 %v1378
      %1388 = vmatprep.subr.bf16.mxu0 0
      %1389 = vmatpush1.bf16.msra.mxu0 0
      %1390 = vmatprep.subr.bf16.mxu0 0
      %1391 = vmatpush1.bf16.msra.mxu0 0
      %1392 = vmatprep.subr.bf16.mxu0 0
      %1393 = vmatpush1.bf16.msra.mxu0 0
      %1394 = vmatprep.subr.bf16.mxu0 0
      %1395 = vmatpush1.bf16.msra.mxu0 0
      %1396 = vmatprep.subr.bf16.mxu0 0
      %1397 = vmatpush1.bf16.msra.mxu0 0
      %1398 = vmatprep.subr.bf16.mxu0 0
      %1399 = vmatpush1.bf16.msra.mxu0 0
      %1400 = vmatprep.subr.bf16.mxu0 0
      %1401 = vmatpush1.bf16.msra.mxu0 0
      %1402 = vmatprep.subr.bf16.mxu0 0
      %1403 = vmatpush1.bf16.msra.mxu0 0
      %1404 = vmatprep.subr.bf16.mxu0 0
      %1405 = vmatpush1.bf16.msra.mxu0 0
      %1406 = vmatprep.subr.bf16.mxu0 0
      %1407 = vmatpush1.bf16.msra.mxu0 0
      %1408 = vmatprep.subr.bf16.mxu0 0
      %1409 = vmatpush1.bf16.msra.mxu0 0
      %1410 = vmatprep.subr.bf16.mxu0 0
      %1411 = vmatpush1.bf16.msra.mxu0 0
      %1412 = vmatprep.mubr.bf16.mxu0 0
      %1413 = vmatmul.mubr.bf16.gmra.mrb[0].mxu0 %v842
      %v1414 = vpop.f32.mrb[0].mxu0
      %v1415 = vadd.f32 0.0, %v1414
      %v1416 = vpop.f32.mrb[0].mxu0
      %v1417 = vpop.f32.mrb[0].mxu0
      %v1418 = vadd.f32 0.0, %v1417
      %v1419 = vpop.f32.mrb[0].mxu0
      %1420 = vmatprep.mubr.bf16.mxu0 0
      %1421 = vmatmul.mubr.bf16.gmra.mrb[0].mxu0 %v845
      %v1422 = vpop.f32.mrb[0].mxu0
      %v1423 = vadd.f32 0.0, %v1422
      %v1424 = vpop.f32.mrb[0].mxu0
      %v1425 = vpop.f32.mrb[0].mxu0
      %v1426 = vadd.f32 0.0, %v1425
      %v1427 = vpop.f32.mrb[0].mxu0
      %1428 = vmatprep.mubr.bf16.mxu0 0
      %1429 = vmatmul.mubr.bf16.gmra.mrb[0].mxu0 %v1161
      %v1430 = vpop.f32.mrb[0].mxu0
      %v1431 = vadd.f32 0.0, %v1430
      %v1432 = vpop.f32.mrb[0].mxu0
      %v1433 = vpop.f32.mrb[0].mxu0
      %v1434 = vadd.f32 0.0, %v1433
      %v1435 = vpop.f32.mrb[0].mxu0
      %1436 = vmatprep.mubr.bf16.mxu0 0
      %1437 = vmatmul.mubr.bf16.gmra.mrb[0].mxu0 %v836
      %v1438 = vpop.f32.mrb[0].mxu0
      %v1439 = vadd.f32 0.0, %v1438
      %v1440 = vpop.f32.mrb[0].mxu0
      %v1441 = vpop.f32.mrb[0].mxu0
      %v1442 = vadd.f32 0.0, %v1441
      %v1443 = vpop.f32.mrb[0].mxu0
      %1444 = vdwg.mxu0
      %v1445 = vadd.f32 %v1340, %v1415
      %v1446 = vadd.f32 %v1341, %v1418
      %v1447 = vadd.f32 %v1342, %v1423
      %v1448 = vadd.f32 %v1343, %v1426
      %v1449 = vadd.f32 %v1344, %v1431
      %v1450 = vadd.f32 %v1345, %v1434
      %v1451 = vadd.f32 %v1346, %v1439
      %v1452 = vadd.f32 %v1347, %v1442
      %s1453 = scalar_lea.vmem %s210, 168
      %v1454 = vld [vmem:[%s1453] sm:$0xf]
      %v1455 = vld [vmem:[%s1453 + $0x4] sm:$0xf]
      %v1456 = vld [vmem:[%s1453 + $0x8] sm:$0xf]
      %v1457 = vld [vmem:[%s1453 + $0xc] sm:$0xf]
      %v1458 = vld [vmem:[%s1453 + $0x10] sm:$0xf]
      %v1459 = vld [vmem:[%s1453 + $0x14] sm:$0xf]
      %v1460 = vld [vmem:[%s1453 + $0x18] sm:$0xf]
      %v1468 = vunpack.c.l.b16 %v1454
      %v1469 = vunpack.c.l.b16 %v1455
      %v1470 = vunpack.c.l.b16 %v1456
      %v1471 = vunpack.c.l.b16 %v1457
      %v1472 = vunpack.c.l.b16 %v1458
      %v1473 = vunpack.c.l.b16 %v1459
      %v1474 = vunpack.c.l.b16 %v1460
      %v1475 = vpack.c.b16 %v1469, %v1468
      %v1476 = vpack.c.b16 %v1471, %v1470
      %v1477 = vpack.c.b16 %v1473, %v1472
      %v1478 = vpack.c.b16 %v1474, %v1474
      %v1483 = vsel %vm847, %v1478, 0
      %1485 = vmatprep.subr.bf16.mxu0 0
      %1486 = vmatpush1.bf16.msra.mxu0 %v1475
      %1487 = vmatprep.subr.bf16.mxu0 0
      %1488 = vmatpush1.bf16.msra.mxu0 %v1476
      %1489 = vmatprep.subr.bf16.mxu0 0
      %1490 = vmatpush1.bf16.msra.mxu0 %v1477
      %1491 = vmatprep.subr.bf16.mxu0 0
      %1492 = vmatpush1.bf16.msra.mxu0 %v1483
      %1493 = vmatprep.subr.bf16.mxu0 0
      %1494 = vmatpush1.bf16.msra.mxu0 0
      %1495 = vmatprep.subr.bf16.mxu0 0
      %1496 = vmatpush1.bf16.msra.mxu0 0
      %1497 = vmatprep.subr.bf16.mxu0 0
      %1498 = vmatpush1.bf16.msra.mxu0 0
      %1499 = vmatprep.subr.bf16.mxu0 0
      %1500 = vmatpush1.bf16.msra.mxu0 0
      %1501 = vmatprep.subr.bf16.mxu0 0
      %1502 = vmatpush1.bf16.msra.mxu0 0
      %1503 = vmatprep.subr.bf16.mxu0 0
      %1504 = vmatpush1.bf16.msra.mxu0 0
      %1505 = vmatprep.subr.bf16.mxu0 0
      %1506 = vmatpush1.bf16.msra.mxu0 0
      %1507 = vmatprep.subr.bf16.mxu0 0
      %1508 = vmatpush1.bf16.msra.mxu0 0
      %1509 = vmatprep.subr.bf16.mxu0 0
      %1510 = vmatpush1.bf16.msra.mxu0 0
      %1511 = vmatprep.subr.bf16.mxu0 0
      %1512 = vmatpush1.bf16.msra.mxu0 0
      %1513 = vmatprep.subr.bf16.mxu0 0
      %1514 = vmatpush1.bf16.msra.mxu0 0
      %1515 = vmatprep.subr.bf16.mxu0 0
      %1516 = vmatpush1.bf16.msra.mxu0 0
      %1517 = vmatprep.mubr.bf16.mxu0 0
      %1518 = vmatmul.mubr.bf16.gmra.mrb[0].mxu0 %v947
      %v1519 = vpop.f32.mrb[0].mxu0
      %v1520 = vadd.f32 0.0, %v1519
      %v1521 = vpop.f32.mrb[0].mxu0
      %v1522 = vpop.f32.mrb[0].mxu0
      %v1523 = vadd.f32 0.0, %v1522
      %v1524 = vpop.f32.mrb[0].mxu0
      %1525 = vmatprep.mubr.bf16.mxu0 0
      %1526 = vmatmul.mubr.bf16.gmra.mrb[0].mxu0 %v1050
      %v1527 = vpop.f32.mrb[0].mxu0
      %v1528 = vadd.f32 0.0, %v1527
      %v1529 = vpop.f32.mrb[0].mxu0
      %v1530 = vpop.f32.mrb[0].mxu0
      %v1531 = vadd.f32 0.0, %v1530
      %v1532 = vpop.f32.mrb[0].mxu0
      %1533 = vmatprep.mubr.bf16.mxu0 0
      %1534 = vmatmul.mubr.bf16.gmra.mrb[0].mxu0 %v1270
      %v1535 = vpop.f32.mrb[0].mxu0
      %v1536 = vadd.f32 0.0, %v1535
      %v1537 = vpop.f32.mrb[0].mxu0
      %v1538 = vpop.f32.mrb[0].mxu0
      %v1539 = vadd.f32 0.0, %v1538
      %v1540 = vpop.f32.mrb[0].mxu0
      %1541 = vmatprep.mubr.bf16.mxu0 0
      %1542 = vmatmul.mubr.bf16.gmra.mrb[0].mxu0 %v836
      %v1543 = vpop.f32.mrb[0].mxu0
      %v1544 = vadd.f32 0.0, %v1543
      %v1545 = vpop.f32.mrb[0].mxu0
      %v1546 = vpop.f32.mrb[0].mxu0
      %v1547 = vadd.f32 0.0, %v1546
      %v1548 = vpop.f32.mrb[0].mxu0
      %1549 = vdwg.mxu0
      %v1550 = vadd.f32 %v1445, %v1520
      %v1551 = vadd.f32 %v1446, %v1523
      %v1552 = vadd.f32 %v1447, %v1528
      %v1553 = vadd.f32 %v1448, %v1531
      %v1554 = vadd.f32 %v1449, %v1536
      %v1555 = vadd.f32 %v1450, %v1539
      %v1556 = vadd.f32 %v1451, %v1544
      %v1557 = vadd.f32 %v1452, %v1547
      %v1558 = vld [vmem:[%s213] sm:$0x1]
      %v1560 = vlaneseq
      %v1561 = vshrl.u32 %v1560, 7
      %v1562 = vsub.s32 0, %v1561
      %v1563 = vrot.slane %v1558, %v1562
      %v1565 = vadd.f32 %v1550, %v1563
      %v1566 = vadd.f32 %v1551, %v1563
      %v1567 = vadd.f32 %v1552, %v1563
      %v1568 = vadd.f32 %v1553, %v1563
      %v1569 = vadd.f32 %v1554, %v1563
      %v1570 = vadd.f32 %v1555, %v1563
      %v1571 = vadd.f32 %v1556, %v1563
      %v1572 = vadd.f32 %v1557, %v1563
      %vm1573 = vcmp.ge.f32.partialorder %v1565, 0.0
      %vm1574 = vcmp.ge.f32.partialorder %v1566, 0.0
      %vm1575 = vcmp.ge.f32.partialorder %v1567, 0.0
      %vm1576 = vcmp.ge.f32.partialorder %v1568, 0.0
      %vm1577 = vcmp.ge.f32.partialorder %v1569, 0.0
      %vm1578 = vcmp.ge.f32.partialorder %v1570, 0.0
      %vm1579 = vcmp.ge.f32.partialorder %v1571, 0.0
      %vm1580 = vcmp.ge.f32.partialorder %v1572, 0.0
      %v1581 = vmul.f32 %v1565, 0.01
      %v1582 = vmul.f32 %v1566, 0.01
      %v1583 = vmul.f32 %v1567, 0.01
      %v1584 = vmul.f32 %v1568, 0.01
      %v1585 = vmul.f32 %v1569, 0.01
      %v1586 = vmul.f32 %v1570, 0.01
      %v1587 = vmul.f32 %v1571, 0.01
      %v1588 = vmul.f32 %v1572, 0.01
      %v1589 = vsel %vm1573, %v1565, %v1581
      %v1590 = vsel %vm1574, %v1566, %v1582
      %v1591 = vsel %vm1575, %v1567, %v1583
      %v1592 = vsel %vm1576, %v1568, %v1584
      %v1593 = vsel %vm1577, %v1569, %v1585
      %v1594 = vsel %vm1578, %v1570, %v1586
      %v1595 = vsel %vm1579, %v1571, %v1587
      %v1596 = vsel %vm1580, %v1572, %v1588
      %v1597 = vpack.c.bf16 %v1590, %v1589
      %v1598 = vpack.c.bf16 %v1592, %v1591
      %v1599 = vpack.c.bf16 %v1594, %v1593
      %v1600 = vpack.c.bf16 %v1596, %v1595
      %v1605 = vunpack.c.l.b16 %v1597
      %v1606 = vunpack.c.h.b16 %v1597
      %v1607 = vunpack.c.l.b16 %v1598
      %v1608 = vunpack.c.h.b16 %v1598
      %v1609 = vunpack.c.l.b16 %v1599
      %v1610 = vunpack.c.h.b16 %v1599
      %v1611 = vunpack.c.l.b16 %v1600
      %v1612 = vunpack.c.h.b16 %v1600
      %v1613 = vpack.c.b16 %v1605, %v1605
      %v1614 = vpack.c.b16 %v1606, %v1606
      %v1615 = vpack.c.b16 %v1607, %v1607
      %v1616 = vpack.c.b16 %v1608, %v1608
      %v1617 = vpack.c.b16 %v1609, %v1609
      %v1618 = vpack.c.b16 %v1610, %v1610
      %v1619 = vpack.c.b16 %v1611, %v1611
      %v1620 = vpack.c.b16 %v1612, %v1612
      %vm1629 = vcmask 125952
      %1630 = vst.msk [vmem:[%s221] sm:$0xf] %vm1629, %v1613
      %1631 = vst.msk [vmem:[%s221 + $0x4] sm:$0xf] %vm1629, %v1614
      %1632 = vst.msk [vmem:[%s221 + $0x8] sm:$0xf] %vm1629, %v1615
      %1633 = vst.msk [vmem:[%s221 + $0xc] sm:$0xf] %vm1629, %v1616
      %1634 = vst.msk [vmem:[%s221 + $0x10] sm:$0xf] %vm1629, %v1617
      %1635 = vst.msk [vmem:[%s221 + $0x14] sm:$0xf] %vm1629, %v1618
      %1636 = vst.msk [vmem:[%s221 + $0x18] sm:$0xf] %vm1629, %v1619
      %1637 = vst.msk [vmem:[%s221 + $0x1c] sm:$0xf] %vm1629, %v1620
      %p1638 = scmp.lt.s32.totalorder %s19, 1
      %s1639 = scalar_select %p1638, %s19, 1
      %p1640 = scmp.lt.s32.totalorder %s18, 0
      %s1641 = scalar_select %p1640, %s18, 0
      %s1642 = smul.addr %s1639, 8
      %s1643 = sadd.s32 %s1641, %s1642
      %s1644 = smul.addr %s1643, 4
      %s1645 = scalar_lea.vmem %s3, %s1644
      // Predicated region
      $region33: #{tpu_custom_call.1} parent=31 // pred_check
        %p1646 = pneg %p124
      $region34: #{tpu_custom_call.1} parent=31 // pred_check_branch
        %1648 = sbr.rel (%p1646) target = $region36
      $region35: #{tpu_custom_call.1} parent=31 // pred_region
        _
      $region36: #{tpu_custom_call.1} parent=31 // pred_fallthru
        _
    $region32: #{tpu_custom_call.1} parent=5 // pred_fallthru
      _
    %p1649 = scmp.le.s32.totalorder 2, %s9
    // Predicated region
    $region37: #{tpu_custom_call.1} parent=5 // pred_check
      %p1650 = pneg %p1649
    $region38: #{tpu_custom_call.1} parent=5 // pred_check_branch
      %1652 = sbr.rel (%p1650) target = $region40
    $region39: #{tpu_custom_call.1} parent=5 // pred_region
      %s1653 = ssub.s32 %s9, 2
      // Predicated region
      $region41: #{tpu_custom_call.1} parent=39 // pred_check
        %p1654 = pneg %p130
      $region42: #{tpu_custom_call.1} parent=39 // pred_check_branch
        %1656 = sbr.rel (%p1654) target = $region44
      $region43: #{tpu_custom_call.1} parent=39 // pred_region
        %p1657 = scmp.lt.s32.totalorder %s21, 1
        %s1658 = scalar_select %p1657, %s21, 1
        %p1659 = scmp.lt.s32.totalorder %s20, 0
        %s1660 = scalar_select %p1659, %s20, 0
        %s1661 = smul.addr %s1658, 8
        %s1662 = sadd.s32 %s1660, %s1661
        %s1663 = smul.addr %s1662, 4
        %s1664 = scalar_lea.vmem %s3, %s1663
      $region44: #{tpu_custom_call.1} parent=39 // pred_fallthru
        _
    $region40: #{tpu_custom_call.1} parent=5 // pred_fallthru
      _
  $region6: #{tpu_custom_call.1} parent=0 // loop_footer
    %s13 = sadd.s32 1, %s9
  $region7: #{tpu_custom_call.1} parent=0 // loop_footer_branch
    %8 = sbr.rel target = $region3
  $region8: #{tpu_custom_call.1} parent=0 // loop_exit
    _

</llo_original>
